<compile_context>
chip_gen: v6e
topology: v6e:2x2x1
jax: 0.10.0
libtpu: 0.0.40
codegen_flags: <defaults>
</compile_context>

<pallas_src>
import functools

import jax
import jax.numpy as jnp
import numpy as np
from jax.experimental import pallas as pl
from jax.experimental.pallas import tpu as pltpu

LANE = 128


def _round_up(a, m):
    return (a + m - 1) // m * m


# ----------------------------------------------------------------------------
# Fused Pallas kernel: all layers, grid=(steps,) iterated sequentially.
# ----------------------------------------------------------------------------
def _gflstm_fused_kernel(B, S, H, Hp, SP, DIN,
                         # inputs
                         x_ref, hcat_ref, hid_ref, cur_ref,
                         wx_ref, bx_ref, wh_ref, bh_ref, wc_ref, bc_ref,
                         # outputs
                         h_out_ref, c_out_ref,
                         # scratch (persists across grid steps)
                         inp_ref):
    l = pl.program_id(0)

    # Layer 0 consumes the (padded) external input; later layers consume the
    # VMEM-resident h carried from the previous grid step.
    @pl.when(l == 0)
    def _():
        inp_ref[...] = x_ref[...]

    inp = inp_ref[...]          # (B, DIN)   f32
    h_l = hid_ref[...]          # (B, Hp)    f32  (original hidden[l])
    hcat = hcat_ref[...]        # (B, S*Hp)  f32  (cat of original hidden)
    c_prev = cur_ref[...]       # (B, Hp)    f32

    # --- 3 fused, lane-dense bf16 matmuls with f32 accumulation --------------
    px = jnp.dot(inp.astype(jnp.bfloat16), wx_ref[...],
                 preferred_element_type=jnp.float32) + bx_ref[...]   # (B, 4Hp+SP)
    ph = jnp.dot(h_l.astype(jnp.bfloat16), wh_ref[...],
                 preferred_element_type=jnp.float32) + bh_ref[...]   # (B, 3Hp)
    pc = jnp.dot(hcat.astype(jnp.bfloat16), wc_ref[...],
                 preferred_element_type=jnp.float32) + bc_ref[...]   # (B, S*Hp+SP)

    # --- gates: every slice offset is a multiple of 128 (vreg-aligned) -------
    f = jax.nn.sigmoid(px[:, 0 * Hp:1 * Hp] + ph[:, 0 * Hp:1 * Hp])
    i = jax.nn.sigmoid(px[:, 1 * Hp:2 * Hp] + ph[:, 1 * Hp:2 * Hp])
    o = jax.nn.sigmoid(px[:, 2 * Hp:3 * Hp] + ph[:, 2 * Hp:3 * Hp])
    cx = px[:, 3 * Hp:4 * Hp]
    g = jax.nn.sigmoid(px[:, 4 * Hp:4 * Hp + SP] + pc[:, S * Hp:S * Hp + SP])

    # --- global gated feedback: sum_s g[:, s] * aux[:, s*Hp:(s+1)*Hp] --------
    # S is a tiny static int; with Hp a multiple of 128 each aux slice is
    # vreg-aligned and each g column is a single lane broadcast (equivalent to
    # the reshape-(B,S,Hp)-and-sum formulation, unrolled for compile safety).
    aux_sum = jnp.zeros((B, Hp), jnp.float32)
    for s in range(S):
        aux_sum = aux_sum + pc[:, s * Hp:(s + 1) * Hp] * g[:, s:s + 1]

    c_t = jnp.tanh(cx + aux_sum)
    c_new = f * c_prev + i * c_t
    h_new = o * c_new

    h_out_ref[...] = h_new
    c_out_ref[...] = c_new

    # Carry h to the next layer's input (stays in VMEM; pad lanes are zero).
    if DIN == Hp:
        inp_ref[...] = h_new
    else:
        inp_ref[:, :Hp] = h_new
        inp_ref[:, Hp:] = jnp.zeros((B, DIN - Hp), jnp.float32)


# ----------------------------------------------------------------------------
# Parameter packing: fuse + pad + stack per-layer weights (bf16) and biases.
# ----------------------------------------------------------------------------
def pack_gflstm_params(params, *, input_dim, hidden_dim, steps):
    H, S = hidden_dim, steps
    Hp = _round_up(H, LANE)
    SP = _round_up(S, LANE)
    DIN = max(_round_up(input_dim, LANE), Hp)
    NX, NH, NC = 4 * Hp + SP, 3 * Hp, S * Hp + SP

    Wx = np.zeros((S, DIN, NX), np.float32)
    bx = np.zeros((S, 1, NX), np.float32)
    Wh = np.zeros((S, Hp, NH), np.float32)
    bh = np.zeros((S, 1, NH), np.float32)
    Wc = np.zeros((S, S * Hp, NC), np.float32)
    bc = np.zeros((S, 1, NC), np.float32)

    for l in range(S):
        (wif, bif, whf, bhf, wii, bii, whi, bhi, wio, bio, who, bho,
         wig, big, whg, bhg, wic, bic, whc, bhc) = [np.asarray(p) for p in params[l]]
        d_in = input_dim if l == 0 else H

        # input projections: [f | i | o | c | g]
        for k, (w, b) in enumerate([(wif, bif), (wii, bii), (wio, bio), (wic, bic)]):
            Wx[l, :d_in, k * Hp:k * Hp + H] = w
            bx[l, 0, k * Hp:k * Hp + H] = b[0]
        Wx[l, :d_in, 4 * Hp:4 * Hp + S] = wig
        bx[l, 0, 4 * Hp:4 * Hp + S] = big[0]

        # recurrent projections: [f | i | o]
        for k, (w, b) in enumerate([(whf, bhf), (whi, bhi), (who, bho)]):
            Wh[l, :H, k * Hp:k * Hp + H] = w
            bh[l, 0, k * Hp:k * Hp + H] = b[0]

        # hcat projections: [aux (h2h_c) | g (h2h_g)] in padded group layout
        for sr in range(S):                       # source hcat group (rows)
            for sc in range(S):                   # destination aux group (cols)
                Wc[l, sr * Hp:sr * Hp + H, sc * Hp:sc * Hp + H] = \
                    whc[sr * H:(sr + 1) * H, sc * H:(sc + 1) * H]
            Wc[l, sr * Hp:sr * Hp + H, S * Hp:S * Hp + S] = whg[sr * H:(sr + 1) * H, :]
        for sc in range(S):
            bc[l, 0, sc * Hp:sc * Hp + H] = bhc[0, sc * H:(sc + 1) * H]
        bc[l, 0, S * Hp:S * Hp + S] = bhg[0]

    return dict(
        Wx=jnp.asarray(Wx, jnp.bfloat16), bx=jnp.asarray(bx, jnp.float32),
        Wh=jnp.asarray(Wh, jnp.bfloat16), bh=jnp.asarray(bh, jnp.float32),
        Wc=jnp.asarray(Wc, jnp.bfloat16), bc=jnp.asarray(bc, jnp.float32),
        dims=dict(H=H, S=S, Hp=Hp, SP=SP, DIN=DIN, NX=NX, NH=NH, NC=NC))


# ----------------------------------------------------------------------------
# Forward wrapper: one pallas_call, grid over layers.
# ----------------------------------------------------------------------------
def gflstm_forward(x, hidden, current, packed):
    d = packed["dims"]
    H, S, Hp, SP, DIN = d["H"], d["S"], d["Hp"], d["SP"], d["DIN"]
    NX, NH, NC = d["NX"], d["NH"], d["NC"]
    B = x.shape[0]

    # Pad/stack activations (pad lanes are exact zeros).
    x_pad = jnp.zeros((B, DIN), jnp.float32).at[:, :x.shape[1]].set(x)
    hid = jnp.zeros((S, B, Hp), jnp.float32).at[:, :, :H].set(jnp.stack(hidden))
    cur = jnp.zeros((S, B, Hp), jnp.float32).at[:, :, :H].set(jnp.stack(current))
    # torch.cat(hidden, 1), in the padded per-group layout (B, S*Hp).
    hcat = jnp.transpose(hid, (1, 0, 2)).reshape(B, S * Hp)

    # TODO(synk): for very large steps*hidden the hcat weight (~(S*Hp)^2 bytes)
    # should be tiled over its output dim instead of loaded whole (v7x VMEM is
    # only 64 MiB); at these shapes everything fits comfortably.

    kernel = functools.partial(_gflstm_fused_kernel, B, S, H, Hp, SP, DIN)

    h_out, c_out = pl.pallas_call(
        kernel,
        grid=(S,),
        in_specs=[
            pl.BlockSpec((B, DIN), lambda l: (0, 0)),            # x_pad
            pl.BlockSpec((B, S * Hp), lambda l: (0, 0)),         # hcat
            pl.BlockSpec((None, B, Hp), lambda l: (l, 0, 0)),    # hidden[l]
            pl.BlockSpec((None, B, Hp), lambda l: (l, 0, 0)),    # current[l]
            pl.BlockSpec((None, DIN, NX), lambda l: (l, 0, 0)),  # Wx[l]
            pl.BlockSpec((None, 1, NX), lambda l: (l, 0, 0)),    # bx[l]
            pl.BlockSpec((None, Hp, NH), lambda l: (l, 0, 0)),   # Wh[l]
            pl.BlockSpec((None, 1, NH), lambda l: (l, 0, 0)),    # bh[l]
            pl.BlockSpec((None, S * Hp, NC), lambda l: (l, 0, 0)),  # Wc[l]
            pl.BlockSpec((None, 1, NC), lambda l: (l, 0, 0)),    # bc[l]
        ],
        out_specs=(
            pl.BlockSpec((None, B, Hp), lambda l: (l, 0, 0)),
            pl.BlockSpec((None, B, Hp), lambda l: (l, 0, 0)),
        ),
        out_shape=(jax.ShapeDtypeStruct((S, B, Hp), jnp.float32),
                   jax.ShapeDtypeStruct((S, B, Hp), jnp.float32)),
        scratch_shapes=[pltpu.VMEM((B, DIN), jnp.float32)],
        compiler_params=pltpu.CompilerParams(
            dimension_semantics=("arbitrary",)),
    )(x_pad, hcat, hid, cur,
      packed["Wx"], packed["bx"], packed["Wh"], packed["bh"],
      packed["Wc"], packed["bc"])

    h_next = [h_out[l, :, :H] for l in range(S)]
    c_next = [c_out[l, :, :H] for l in range(S)]
    return h_next, c_next


# ----------------------------------------------------------------------------
# Deterministic parameter construction (same shapes as the PyTorch __init__).
# ----------------------------------------------------------------------------
def init_gflstm_params(key, input_dim, hidden_dim, steps):
    def linear(key, fan_in, fan_out):
        kw, kb = jax.random.split(key)
        bound = 1.0 / jnp.sqrt(fan_in)
        w = jax.random.uniform(kw, (fan_in, fan_out), jnp.float32, -bound, bound)
        b = jax.random.uniform(kb, (1, fan_out), jnp.float32, -bound, bound)
        return w, b

    params = []
    for l in range(steps):
        d_in = input_dim if l == 0 else hidden_dim
        keys = jax.random.split(jax.random.fold_in(key, l), 10)
        wif, bif = linear(keys[0], d_in, hidden_dim)
        whf, bhf = linear(keys[1], hidden_dim, hidden_dim)
        wii, bii = linear(keys[2], d_in, hidden_dim)
        whi, bhi = linear(keys[3], hidden_dim, hidden_dim)
        wio, bio = linear(keys[4], d_in, hidden_dim)
        who, bho = linear(keys[5], hidden_dim, hidden_dim)
        wig, big = linear(keys[6], d_in, steps)
        whg, bhg = linear(keys[7], steps * hidden_dim, steps)
        wic, bic = linear(keys[8], d_in, hidden_dim)
        whc, bhc = linear(keys[9], steps * hidden_dim, steps * hidden_dim)
        params.append([wif, bif, whf, bhf,
                       wii, bii, whi, bhi,
                       wio, bio, who, bho,
                       wig, big, whg, bhg,
                       wic, bic, whc, bhc])
    return params


# ----------------------------------------------------------------------------
# Pure-JAX f32 reference (mirror of the PyTorch code) for verification.
# ----------------------------------------------------------------------------
def gflstm_forward_ref(x, hidden, current, params, *, steps, hidden_dim):
    hcat = jnp.concatenate(hidden, axis=1)
    h_next, c_next = [], []
    inp = x
    for l in range(steps):
        (wif, bif, whf, bhf, wii, bii, whi, bhi, wio, bio, who, bho,
         wig, big, whg, bhg, wic, bic, whc, bhc) = params[l]
        f = jax.nn.sigmoid(inp @ wif + bif + hidden[l] @ whf + bhf)
        i = jax.nn.sigmoid(inp @ wii + bii + hidden[l] @ whi + bhi)
        g = jax.nn.sigmoid(inp @ wig + big + hcat @ whg + bhg)
        aux = (hcat @ whc + bhc).reshape(-1, steps, hidden_dim)
        aux = (aux * g.reshape(-1, steps, 1)).sum(axis=1)
        c_t = jnp.tanh(inp @ wic + bic + aux)
        c = f * current[l] + i * c_t
        o = jax.nn.sigmoid(inp @ wio + bio + hidden[l] @ who + bho)
        h = o * c
        inp = h
        h_next.append(h)
        c_next.append(c)
    return h_next, c_next


if __name__ == "__main__":
    B, INPUT_DIM, HIDDEN_DIM, STEPS = 4, 16, 32, 2

    root = jax.random.PRNGKey(0)
    k_x, k_h, k_c, k_p = jax.random.split(root, 4)

    x = jax.random.normal(k_x, (B, INPUT_DIM), jnp.float32)
    hidden = [jax.random.normal(jax.random.fold_in(k_h, l), (B, HIDDEN_DIM), jnp.float32)
              for l in range(STEPS)]
    current = [jax.random.normal(jax.random.fold_in(k_c, l), (B, HIDDEN_DIM), jnp.float32)
               for l in range(STEPS)]
    params = init_gflstm_params(k_p, INPUT_DIM, HIDDEN_DIM, STEPS)
    packed = pack_gflstm_params(params, input_dim=INPUT_DIM,
                                hidden_dim=HIDDEN_DIM, steps=STEPS)

    h_next, c_next = gflstm_forward(x, hidden, current, packed)
    jax.block_until_ready(h_next)
    jax.block_until_ready(c_next)

    h_ref, c_ref = gflstm_forward_ref(x, hidden, current, params,
                                      steps=STEPS, hidden_dim=HIDDEN_DIM)
    # bf16 matmul inputs (f32 accumulate) vs pure-f32 reference -> loose tol.
    for a, b in zip(h_next + c_next, h_ref + c_ref):
        assert jnp.allclose(a, b, atol=3e-2, rtol=3e-2), "mismatch vs reference"

    print("KERNEL_OK")
</pallas_src>

<mosaic_0001>
module attributes {stable_mosaic.version = 11 : i64} {
  func.func @_gflstm_fused_kernel(%arg0: i32, %arg1: memref<4x128xf32, #tpu.memory_space<vmem>>, %arg2: memref<4x256xf32, #tpu.memory_space<vmem>>, %arg3: memref<1x4x128xf32, #tpu.memory_space<vmem>>, %arg4: memref<1x4x128xf32, #tpu.memory_space<vmem>>, %arg5: memref<1x128x640xbf16, #tpu.memory_space<vmem>>, %arg6: memref<1x1x640xf32, #tpu.memory_space<vmem>>, %arg7: memref<1x128x384xbf16, #tpu.memory_space<vmem>>, %arg8: memref<1x1x384xf32, #tpu.memory_space<vmem>>, %arg9: memref<1x256x384xbf16, #tpu.memory_space<vmem>>, %arg10: memref<1x1x384xf32, #tpu.memory_space<vmem>>, %arg11: memref<1x4x128xf32, #tpu.memory_space<vmem>>, %arg12: memref<1x4x128xf32, #tpu.memory_space<vmem>>, %arg13: memref<4x128xf32, #tpu.memory_space<vmem>>) attributes {dimension_semantics = [#tpu.dimension_semantics<arbitrary>], iteration_bounds = array<i64: 2>, scalar_prefetch = 0 : i64, scratch_operands = 1 : i64, tpu.core_type = #tpu.core_type<tc>, window_params = [{pipeline_mode = #tpu.pipeline_mode<synchronous>, transform_indices = @transform_0, window_bounds = array<i64: 4, 128>}, {pipeline_mode = #tpu.pipeline_mode<synchronous>, transform_indices = @transform_1, window_bounds = array<i64: 4, 256>}, {transform_indices = @transform_2, window_bounds = array<i64: 1, 4, 128>}, {transform_indices = @transform_3, window_bounds = array<i64: 1, 4, 128>}, {transform_indices = @transform_4, window_bounds = array<i64: 1, 128, 640>}, {transform_indices = @transform_5, window_bounds = array<i64: 1, 1, 640>}, {transform_indices = @transform_6, window_bounds = array<i64: 1, 128, 384>}, {transform_indices = @transform_7, window_bounds = array<i64: 1, 1, 384>}, {transform_indices = @transform_8, window_bounds = array<i64: 1, 256, 384>}, {transform_indices = @transform_9, window_bounds = array<i64: 1, 1, 384>}, {transform_indices = @transform_10, window_bounds = array<i64: 1, 4, 128>}, {transform_indices = @transform_11, window_bounds = array<i64: 1, 4, 128>}]} {
    %c0_i32 = arith.constant 0 : i32
    %0 = arith.cmpi eq, %arg0, %c0_i32 : i32
    %1 = arith.extui %0 : i1 to i32
    %c0_i32_0 = arith.constant 0 : i32
    %2 = arith.cmpi ne, %1, %c0_i32_0 : i32
    scf.if %2 {
      %c0_43 = arith.constant 0 : index
      %c0_44 = arith.constant 0 : index
      %90 = vector.load %arg1[%c0_43, %c0_44] : memref<4x128xf32, #tpu.memory_space<vmem>>, vector<4x128xf32>
      %c0_45 = arith.constant 0 : index
      %c0_46 = arith.constant 0 : index
      %91 = vector.load %arg13[%c0_45, %c0_46] : memref<4x128xf32, #tpu.memory_space<vmem>>, vector<4x128xf32>
      tpu.vector_store %arg13[%c0_45, %c0_46], %90 {strides = array<i32>} : memref<4x128xf32, #tpu.memory_space<vmem>>, vector<4x128xf32>,
    } else {
    }
    %c0 = arith.constant 0 : index
    %c0_1 = arith.constant 0 : index
    %3 = vector.load %arg13[%c0, %c0_1] : memref<4x128xf32, #tpu.memory_space<vmem>>, vector<4x128xf32>
    %c0_2 = arith.constant 0 : index
    %c0_3 = arith.constant 0 : index
    %c0_4 = arith.constant 0 : index
    %4 = vector.load %arg3[%c0_2, %c0_3, %c0_4] : memref<1x4x128xf32, #tpu.memory_space<vmem>>, vector<1x4x128xf32>
    %5 = vector.shape_cast %4 : vector<1x4x128xf32> to vector<4x128xf32>
    %c0_5 = arith.constant 0 : index
    %c0_6 = arith.constant 0 : index
    %6 = vector.load %arg2[%c0_5, %c0_6] : memref<4x256xf32, #tpu.memory_space<vmem>>, vector<4x256xf32>
    %c0_7 = arith.constant 0 : index
    %c0_8 = arith.constant 0 : index
    %c0_9 = arith.constant 0 : index
    %7 = vector.load %arg4[%c0_7, %c0_8, %c0_9] : memref<1x4x128xf32, #tpu.memory_space<vmem>>, vector<1x4x128xf32>
    %8 = vector.shape_cast %7 : vector<1x4x128xf32> to vector<4x128xf32>
    %9 = arith.truncf %3 : vector<4x128xf32> to vector<4x128xbf16>
    %c0_10 = arith.constant 0 : index
    %c0_11 = arith.constant 0 : index
    %c0_12 = arith.constant 0 : index
    %10 = vector.load %arg5[%c0_10, %c0_11, %c0_12] : memref<1x128x640xbf16, #tpu.memory_space<vmem>>, vector<1x128x640xbf16>
    %11 = vector.shape_cast %10 : vector<1x128x640xbf16> to vector<128x640xbf16>
    %cst = arith.constant dense<0.000000e+00> : vector<4x640xf32>
    %12 = tpu.matmul %9, %11, %cst {dimension_numbers = #tpu.dot_dimension_numbers<[1], [0], [0], [1], [0, 0, 1, 1], [], []>} : vector<4x128xbf16>, vector<128x640xbf16>, vector<4x640xf32> -> vector<4x640xf32>
    %c0_13 = arith.constant 0 : index
    %c0_14 = arith.constant 0 : index
    %c0_15 = arith.constant 0 : index
    %13 = vector.load %arg6[%c0_13, %c0_14, %c0_15] : memref<1x1x640xf32, #tpu.memory_space<vmem>>, vector<1x1x640xf32>
    %14 = vector.shape_cast %13 : vector<1x1x640xf32> to vector<1x640xf32>
    %15 = vector.broadcast %14 : vector<1x640xf32> to vector<4x640xf32>
    %16 = arith.addf %12, %15 : vector<4x640xf32>
    %17 = arith.truncf %5 : vector<4x128xf32> to vector<4x128xbf16>
    %c0_16 = arith.constant 0 : index
    %c0_17 = arith.constant 0 : index
    %c0_18 = arith.constant 0 : index
    %18 = vector.load %arg7[%c0_16, %c0_17, %c0_18] : memref<1x128x384xbf16, #tpu.memory_space<vmem>>, vector<1x128x384xbf16>
    %19 = vector.shape_cast %18 : vector<1x128x384xbf16> to vector<128x384xbf16>
    %cst_19 = arith.constant dense<0.000000e+00> : vector<4x384xf32>
    %20 = tpu.matmul %17, %19, %cst_19 {dimension_numbers = #tpu.dot_dimension_numbers<[1], [0], [0], [1], [0, 0, 1, 1], [], []>} : vector<4x128xbf16>, vector<128x384xbf16>, vector<4x384xf32> -> vector<4x384xf32>
    %c0_20 = arith.constant 0 : index
    %c0_21 = arith.constant 0 : index
    %c0_22 = arith.constant 0 : index
    %21 = vector.load %arg8[%c0_20, %c0_21, %c0_22] : memref<1x1x384xf32, #tpu.memory_space<vmem>>, vector<1x1x384xf32>
    %22 = vector.shape_cast %21 : vector<1x1x384xf32> to vector<1x384xf32>
    %23 = vector.broadcast %22 : vector<1x384xf32> to vector<4x384xf32>
    %24 = arith.addf %20, %23 : vector<4x384xf32>
    %25 = arith.truncf %6 : vector<4x256xf32> to vector<4x256xbf16>
    %c0_23 = arith.constant 0 : index
    %c0_24 = arith.constant 0 : index
    %c0_25 = arith.constant 0 : index
    %26 = vector.load %arg9[%c0_23, %c0_24, %c0_25] : memref<1x256x384xbf16, #tpu.memory_space<vmem>>, vector<1x256x384xbf16>
    %27 = vector.shape_cast %26 : vector<1x256x384xbf16> to vector<256x384xbf16>
    %cst_26 = arith.constant dense<0.000000e+00> : vector<4x384xf32>
    %28 = tpu.matmul %25, %27, %cst_26 {dimension_numbers = #tpu.dot_dimension_numbers<[1], [0], [0], [1], [0, 0, 1, 1], [], []>} : vector<4x256xbf16>, vector<256x384xbf16>, vector<4x384xf32> -> vector<4x384xf32>
    %c0_27 = arith.constant 0 : index
    %c0_28 = arith.constant 0 : index
    %c0_29 = arith.constant 0 : index
    %29 = vector.load %arg10[%c0_27, %c0_28, %c0_29] : memref<1x1x384xf32, #tpu.memory_space<vmem>>, vector<1x1x384xf32>
    %30 = vector.shape_cast %29 : vector<1x1x384xf32> to vector<1x384xf32>
    %31 = vector.broadcast %30 : vector<1x384xf32> to vector<4x384xf32>
    %32 = arith.addf %28, %31 : vector<4x384xf32>
    %33 = vector.extract_strided_slice %16 {offsets = [0, 0], sizes = [4, 128], strides = [1, 1]} : vector<4x640xf32> to vector<4x128xf32>
    %34 = vector.extract_strided_slice %24 {offsets = [0, 0], sizes = [4, 128], strides = [1, 1]} : vector<4x384xf32> to vector<4x128xf32>
    %35 = arith.addf %33, %34 : vector<4x128xf32>
    %36 = arith.negf %35 : vector<4x128xf32>
    %37 = math.exp %36 : vector<4x128xf32>
    %cst_30 = arith.constant 1.000000e+00 : f32
    %38 = vector.broadcast %cst_30 : f32 to vector<4x128xf32>
    %39 = arith.addf %38, %37 : vector<4x128xf32>
    %40 = arith.divf %38, %39 : vector<4x128xf32>
    %41 = vector.extract_strided_slice %16 {offsets = [0, 128], sizes = [4, 128], strides = [1, 1]} : vector<4x640xf32> to vector<4x128xf32>
    %42 = vector.extract_strided_slice %24 {offsets = [0, 128], sizes = [4, 128], strides = [1, 1]} : vector<4x384xf32> to vector<4x128xf32>
    %43 = arith.addf %41, %42 : vector<4x128xf32>
    %44 = arith.negf %43 : vector<4x128xf32>
    %45 = math.exp %44 : vector<4x128xf32>
    %cst_31 = arith.constant 1.000000e+00 : f32
    %46 = vector.broadcast %cst_31 : f32 to vector<4x128xf32>
    %47 = arith.addf %46, %45 : vector<4x128xf32>
    %48 = arith.divf %46, %47 : vector<4x128xf32>
    %49 = vector.extract_strided_slice %16 {offsets = [0, 256], sizes = [4, 128], strides = [1, 1]} : vector<4x640xf32> to vector<4x128xf32>
    %50 = vector.extract_strided_slice %24 {offsets = [0, 256], sizes = [4, 128], strides = [1, 1]} : vector<4x384xf32> to vector<4x128xf32>
    %51 = arith.addf %49, %50 : vector<4x128xf32>
    %52 = arith.negf %51 : vector<4x128xf32>
    %53 = math.exp %52 : vector<4x128xf32>
    %cst_32 = arith.constant 1.000000e+00 : f32
    %54 = vector.broadcast %cst_32 : f32 to vector<4x128xf32>
    %55 = arith.addf %54, %53 : vector<4x128xf32>
    %56 = arith.divf %54, %55 : vector<4x128xf32>
    %57 = vector.extract_strided_slice %16 {offsets = [0, 384], sizes = [4, 128], strides = [1, 1]} : vector<4x640xf32> to vector<4x128xf32>
    %58 = vector.extract_strided_slice %16 {offsets = [0, 512], sizes = [4, 128], strides = [1, 1]} : vector<4x640xf32> to vector<4x128xf32>
    %59 = vector.extract_strided_slice %32 {offsets = [0, 256], sizes = [4, 128], strides = [1, 1]} : vector<4x384xf32> to vector<4x128xf32>
    %60 = arith.addf %58, %59 : vector<4x128xf32>
    %61 = arith.negf %60 : vector<4x128xf32>
    %62 = math.exp %61 : vector<4x128xf32>
    %cst_33 = arith.constant 1.000000e+00 : f32
    %63 = vector.broadcast %cst_33 : f32 to vector<4x128xf32>
    %64 = arith.addf %63, %62 : vector<4x128xf32>
    %65 = arith.divf %63, %64 : vector<4x128xf32>
    %cst_34 = arith.constant 0.000000e+00 : f32
    %66 = vector.broadcast %cst_34 : f32 to vector<4x128xf32>
    %67 = vector.extract_strided_slice %32 {offsets = [0, 0], sizes = [4, 128], strides = [1, 1]} : vector<4x384xf32> to vector<4x128xf32>
    %68 = vector.extract_strided_slice %65 {offsets = [0, 0], sizes = [4, 1], strides = [1, 1]} : vector<4x128xf32> to vector<4x1xf32>
    %69 = vector.broadcast %68 : vector<4x1xf32> to vector<4x128xf32>
    %70 = arith.mulf %67, %69 : vector<4x128xf32>
    %71 = arith.addf %66, %70 : vector<4x128xf32>
    %72 = vector.extract_strided_slice %32 {offsets = [0, 128], sizes = [4, 128], strides = [1, 1]} : vector<4x384xf32> to vector<4x128xf32>
    %73 = vector.extract_strided_slice %65 {offsets = [0, 1], sizes = [4, 1], strides = [1, 1]} : vector<4x128xf32> to vector<4x1xf32>
    %74 = vector.broadcast %73 : vector<4x1xf32> to vector<4x128xf32>
    %75 = arith.mulf %72, %74 : vector<4x128xf32>
    %76 = arith.addf %71, %75 : vector<4x128xf32>
    %77 = arith.addf %57, %76 : vector<4x128xf32>
    %78 = math.tanh %77 : vector<4x128xf32>
    %79 = arith.mulf %40, %8 : vector<4x128xf32>
    %80 = arith.mulf %48, %78 : vector<4x128xf32>
    %81 = arith.addf %79, %80 : vector<4x128xf32>
    %82 = arith.mulf %56, %81 : vector<4x128xf32>
    %c0_35 = arith.constant 0 : index
    %c0_36 = arith.constant 0 : index
    %c0_37 = arith.constant 0 : index
    %83 = vector.load %arg11[%c0_35, %c0_36, %c0_37] : memref<1x4x128xf32, #tpu.memory_space<vmem>>, vector<1x4x128xf32>
    %84 = vector.shape_cast %83 : vector<1x4x128xf32> to vector<4x128xf32>
    %85 = vector.shape_cast %82 : vector<4x128xf32> to vector<1x4x128xf32>
    tpu.vector_store %arg11[%c0_35, %c0_36, %c0_37], %85 {strides = array<i32>} : memref<1x4x128xf32, #tpu.memory_space<vmem>>, vector<1x4x128xf32>,
    %c0_38 = arith.constant 0 : index
    %c0_39 = arith.constant 0 : index
    %c0_40 = arith.constant 0 : index
    %86 = vector.load %arg12[%c0_38, %c0_39, %c0_40] : memref<1x4x128xf32, #tpu.memory_space<vmem>>, vector<1x4x128xf32>
    %87 = vector.shape_cast %86 : vector<1x4x128xf32> to vector<4x128xf32>
    %88 = vector.shape_cast %81 : vector<4x128xf32> to vector<1x4x128xf32>
    tpu.vector_store %arg12[%c0_38, %c0_39, %c0_40], %88 {strides = array<i32>} : memref<1x4x128xf32, #tpu.memory_space<vmem>>, vector<1x4x128xf32>,
    %c0_41 = arith.constant 0 : index
    %c0_42 = arith.constant 0 : index
    %89 = vector.load %arg13[%c0_41, %c0_42] : memref<4x128xf32, #tpu.memory_space<vmem>>, vector<4x128xf32>
    tpu.vector_store %arg13[%c0_41, %c0_42], %82 {strides = array<i32>} : memref<4x128xf32, #tpu.memory_space<vmem>>, vector<4x128xf32>,
    return
  }
  func.func @transform_0(%arg0: i32) -> (i32, i32) {
    %c0_i32 = arith.constant 0 : i32
    %c0_i32_0 = arith.constant 0 : i32
    %c0_i32_1 = arith.constant 0 : i32
    return %c0_i32, %c0_i32_0 : i32, i32
  }
  func.func @transform_1(%arg0: i32) -> (i32, i32) {
    %c0_i32 = arith.constant 0 : i32
    %c0_i32_0 = arith.constant 0 : i32
    %c0_i32_1 = arith.constant 0 : i32
    return %c0_i32, %c0_i32_0 : i32, i32
  }
  func.func @transform_2(%arg0: i32) -> (i32, i32, i32) {
    %c0_i32 = arith.constant 0 : i32
    %c0_i32_0 = arith.constant 0 : i32
    %c0_i32_1 = arith.constant 0 : i32
    return %arg0, %c0_i32, %c0_i32_0 : i32, i32, i32
  }
  func.func @transform_3(%arg0: i32) -> (i32, i32, i32) {
    %c0_i32 = arith.constant 0 : i32
    %c0_i32_0 = arith.constant 0 : i32
    %c0_i32_1 = arith.constant 0 : i32
    return %arg0, %c0_i32, %c0_i32_0 : i32, i32, i32
  }
  func.func @transform_4(%arg0: i32) -> (i32, i32, i32) {
    %c0_i32 = arith.constant 0 : i32
    %c0_i32_0 = arith.constant 0 : i32
    %c0_i32_1 = arith.constant 0 : i32
    return %arg0, %c0_i32, %c0_i32_0 : i32, i32, i32
  }
  func.func @transform_5(%arg0: i32) -> (i32, i32, i32) {
    %c0_i32 = arith.constant 0 : i32
    %c0_i32_0 = arith.constant 0 : i32
    %c0_i32_1 = arith.constant 0 : i32
    return %arg0, %c0_i32, %c0_i32_0 : i32, i32, i32
  }
  func.func @transform_6(%arg0: i32) -> (i32, i32, i32) {
    %c0_i32 = arith.constant 0 : i32
    %c0_i32_0 = arith.constant 0 : i32
    %c0_i32_1 = arith.constant 0 : i32
    return %arg0, %c0_i32, %c0_i32_0 : i32, i32, i32
  }
  func.func @transform_7(%arg0: i32) -> (i32, i32, i32) {
    %c0_i32 = arith.constant 0 : i32
    %c0_i32_0 = arith.constant 0 : i32
    %c0_i32_1 = arith.constant 0 : i32
    return %arg0, %c0_i32, %c0_i32_0 : i32, i32, i32
  }
  func.func @transform_8(%arg0: i32) -> (i32, i32, i32) {
    %c0_i32 = arith.constant 0 : i32
    %c0_i32_0 = arith.constant 0 : i32
    %c0_i32_1 = arith.constant 0 : i32
    return %arg0, %c0_i32, %c0_i32_0 : i32, i32, i32
  }
  func.func @transform_9(%arg0: i32) -> (i32, i32, i32) {
    %c0_i32 = arith.constant 0 : i32
    %c0_i32_0 = arith.constant 0 : i32
    %c0_i32_1 = arith.constant 0 : i32
    return %arg0, %c0_i32, %c0_i32_0 : i32, i32, i32
  }
  func.func @transform_10(%arg0: i32) -> (i32, i32, i32) {
    %c0_i32 = arith.constant 0 : i32
    %c0_i32_0 = arith.constant 0 : i32
    %c0_i32_1 = arith.constant 0 : i32
    return %arg0, %c0_i32, %c0_i32_0 : i32, i32, i32
  }
  func.func @transform_11(%arg0: i32) -> (i32, i32, i32) {
    %c0_i32 = arith.constant 0 : i32
    %c0_i32_0 = arith.constant 0 : i32
    %c0_i32_1 = arith.constant 0 : i32
    return %arg0, %c0_i32, %c0_i32_0 : i32, i32, i32
  }
}

</mosaic_0001>

<llo_original>
// kernel: tpu_custom_call.1
$region0: #{tpu_custom_call.1}
  #allocation0 [shape = 'u32[]', space=smem, size = 0x4, offset = 0x4, fixed_abs, tag = 'smem constant byte address 0x4 - core index']
  #allocation1 [shape = 'u32[144,128]{1,0:T(1,128)}', space=vmem, size = 0x12000, scoped, tag = 'internal scratch']
  #allocation2 [shape = 'f32[4,128]{1,0:T(4,128)}', space=vmem, size = 0x800, scoped, tag = 'scratch operand']
  %s0 = inlined_call_operand.hbm [shape: f32[4,128], index: 0, kind: input, shape index: {}]
  %s1 = inlined_call_operand.hbm [shape: f32[4,256], index: 1, kind: input, shape index: {}]
  %s2 = inlined_call_operand.hbm [shape: f32[2,4,128], index: 2, kind: input, shape index: {}]
  %s3 = inlined_call_operand.hbm [shape: f32[2,4,128], index: 3, kind: input, shape index: {}]
  %s4 = inlined_call_operand.hbm [shape: bf16[2,128,640], index: 4, kind: input, shape index: {}]
  %s5 = inlined_call_operand.hbm [shape: f32[2,1,640], index: 5, kind: input, shape index: {}]
  %s6 = inlined_call_operand.hbm [shape: bf16[2,128,384], index: 6, kind: input, shape index: {}]
  %s7 = inlined_call_operand.vmem [shape: f32[2,1,384], index: 7, kind: input, shape index: {}]
  %s8 = inlined_call_operand.hbm [shape: bf16[2,256,384], index: 8, kind: input, shape index: {}]
  %s9 = inlined_call_operand.vmem [shape: f32[2,1,384], index: 9, kind: input, shape index: {}]
  %s10 = inlined_call_operand.hbm [shape: f32[2,4,128], index: 10, kind: output, shape index: {0}]
  %s11 = inlined_call_operand.hbm [shape: f32[2,4,128], index: 11, kind: output, shape index: {1}]
  %12 = xla_tuple %s10, %s11
  %s13 = sld [smem:[#allocation0]]
  $region117: #{tpu_custom_call.1} parent=0
    _
  %s15 = ssub.s32 1, %s13
  %s16 = scalar_select 0, %s15, %s13
  $region1: #{tpu_custom_call.1} parent=0
    #allocation3 [shape = 'u8[2048]{0}', space=vmem, size = 0x800, scoped, tag = 'input window, operand 0, single buffered']
    #allocation4 [shape = 's32[2]{0}', space=sflag, size = 0x8, scoped, tag = 'scoped memory for tpu_custom_call.1']
    #allocation5 [shape = 's32[2]{0}', space=sflag, size = 0x8, scoped, tag = 'scoped memory for tpu_custom_call.1']
    #allocation6 [shape = 'u8[4096]{0}', space=vmem, size = 0x1000, scoped, tag = 'input window, operand 1, single buffered']
    #allocation7 [shape = 's32[1]{0}', space=sflag, size = 0x4, scoped, tag = 'scoped memory for tpu_custom_call.1']
    #allocation8 [shape = 'u8[4096]{0}', space=vmem, size = 0x1000, scoped, tag = 'input window, operand 2']
    #allocation9 [shape = 'u8[4096]{0}', space=vmem, size = 0x1000, scoped, tag = 'input window, operand 3']
    #allocation10 [shape = 'u8[327680]{0}', space=vmem, size = 0x50000, scoped, tag = 'input window, operand 4']
    #allocation11 [shape = 'u8[5120]{0}', space=vmem, size = 0x1400, scoped, tag = 'input window, operand 5']
    #allocation12 [shape = 'u8[196608]{0}', space=vmem, size = 0x30000, scoped, tag = 'input window, operand 6']
    #allocation13 [shape = 'u8[393216]{0}', space=vmem, size = 0x60000, scoped, tag = 'input window, operand 8']
    #allocation14 [shape = 'u8[4096]{0}', space=vmem, size = 0x1000, scoped, tag = 'output window, operand 0']
    #allocation15 [shape = 'u8[4096]{0}', space=vmem, size = 0x1000, scoped, tag = 'output window, operand 1']
    #allocation16 [shape = 's32[2]{0}', space=sflag, size = 0x8, scoped, tag = 'scoped memory for tpu_custom_call.1']
    %17 = vsyncpa [#allocation4], 0
    %18 = vsyncpa [#allocation7], 0
    %19 = vsyncpa [#allocation5], 0
    %s20 = scalar_lea.sflag [#allocation5], 1
    %21 = vsyncpa %s20, 0
    %22 = vsyncpa [#allocation16], 0
    %s23 = scalar_lea.sflag [#allocation16], 1
    %24 = vsyncpa %s23, 0
    loop: start=0, step=1, limit=4
    $region2: #{tpu_custom_call.1} parent=1 // loop_pre_header
      _
    $region3: #{tpu_custom_call.1} parent=1 // loop_header
      %s26 = sphi 0, %s30
      %p27 = scmp.ge.s32.totalorder %s26, 4
      %s34 = sphi 0, %s34
      %s36 = sphi 0, %s34
      %s37 = sphi 0, %s36
      %s51 = sphi 0, %s37
      %s55 = sphi 0, %s55
      %s57 = sphi 0, %s55
      %s58 = sphi 0, %s57
      %s72 = sphi 0, %s58
      %s78 = sphi 0, %s80
      %s81 = sphi 0, %s78
      %s82 = sphi 0, %s81
      %s98 = sphi 0, %s82
      %s104 = sphi 0, %s106
      %s107 = sphi 0, %s104
      %s108 = sphi 0, %s107
      %s124 = sphi 0, %s108
      %s130 = sphi 0, %s132
      %s133 = sphi 0, %s130
      %s134 = sphi 0, %s133
      %s150 = sphi 0, %s134
      %s156 = sphi 0, %s158
      %s159 = sphi 0, %s156
      %s160 = sphi 0, %s159
      %s176 = sphi 0, %s160
      %s182 = sphi 0, %s184
      %s185 = sphi 0, %s182
      %s186 = sphi 0, %s185
      %s202 = sphi 0, %s186
      %s208 = sphi 0, %s210
      %s211 = sphi 0, %s208
      %s212 = sphi 0, %s211
      %s228 = sphi 0, %s212
      %s234 = sphi 0, %s236
      %s237 = sphi 0, %s234
      %s238 = sphi 0, %s237
      %s254 = sphi 0, %s238
      %s260 = sphi 0, %s262
      %s263 = sphi 0, %s260
      %s264 = sphi 0, %s263
      %s280 = sphi 0, %s264
      %s286 = sphi 0, %s288
      %s289 = sphi 0, %s286
      %s290 = sphi 0, %s289
      %s306 = sphi 0, %s290
      %s312 = sphi 0, %s314
      %s315 = sphi 0, %s312
      %s316 = sphi 0, %s315
      %s332 = sphi 0, %s316
    $region4: #{tpu_custom_call.1} parent=1 // loop_header_branch
      %29 = sbr.rel (%p27) target = $region8
    $region5: #{tpu_custom_call.1} parent=1 // loop_body
      %s31 = ssub.s32 %s26, 1
      %s32 = ssub.s32 %s26, 2
      %s33 = sadd.s32 %s26, 1
      %s35 = sadd.s32 %s34, 1
      %p38 = scmp.eq.s32.totalorder %s26, 1
      %p39 = scmp.ne.s32.totalorder %s34, %s36
      %p40 = scmp.eq.s32.totalorder %s26, 0
      %p41 = por %p39, %p40
      %p42 = scmp.ne.s32.totalorder %s34, %s36
      %p43 = scmp.eq.s32.totalorder %s31, 1
      %p44 = por %p42, %p43
      %p45 = scmp.ne.s32.totalorder %s36, %s37
      %p46 = scmp.eq.s32.totalorder %s31, 0
      %p47 = por %p45, %p46
      %p48 = scmp.ne.s32.totalorder %s36, %s37
      %p49 = scmp.eq.s32.totalorder %s32, 1
      %p50 = por %p48, %p49
      %p52 = scmp.ne.s32.totalorder %s37, %s51
      %p53 = scmp.eq.s32.totalorder %s32, 0
      %p54 = por %p52, %p53
      %s56 = sadd.s32 %s55, 1
      %p59 = scmp.eq.s32.totalorder %s26, 1
      %p60 = scmp.ne.s32.totalorder %s55, %s57
      %p61 = scmp.eq.s32.totalorder %s26, 0
      %p62 = por %p60, %p61
      %p63 = scmp.ne.s32.totalorder %s55, %s57
      %p64 = scmp.eq.s32.totalorder %s31, 1
      %p65 = por %p63, %p64
      %p66 = scmp.ne.s32.totalorder %s57, %s58
      %p67 = scmp.eq.s32.totalorder %s31, 0
      %p68 = por %p66, %p67
      %p69 = scmp.ne.s32.totalorder %s57, %s58
      %p70 = scmp.eq.s32.totalorder %s32, 1
      %p71 = por %p69, %p70
      %p73 = scmp.ne.s32.totalorder %s58, %s72
      %p74 = scmp.eq.s32.totalorder %s32, 0
      %p75 = por %p73, %p74
      %s76 = ssub.s32 %s26, %s33
      %p77 = scmp.eq.s32.totalorder %s76, 0
      %s79 = sadd.s32 %s78, 1
      %s80 = scalar_select %p77, %s78, %s79
      %p83 = pneg %p77
      %p84 = scmp.eq.s32.totalorder %s26, 1
      %p85 = por %p83, %p84
      %p86 = scmp.ne.s32.totalorder %s78, %s81
      %p87 = scmp.eq.s32.totalorder %s26, 0
      %p88 = por %p86, %p87
      %p89 = scmp.ne.s32.totalorder %s78, %s81
      %p90 = scmp.eq.s32.totalorder %s31, 1
      %p91 = por %p89, %p90
      %p92 = scmp.ne.s32.totalorder %s81, %s82
      %p93 = scmp.eq.s32.totalorder %s31, 0
      %p94 = por %p92, %p93
      %p95 = scmp.ne.s32.totalorder %s81, %s82
      %p96 = scmp.eq.s32.totalorder %s32, 1
      %p97 = por %p95, %p96
      %p99 = scmp.ne.s32.totalorder %s82, %s98
      %p100 = scmp.eq.s32.totalorder %s32, 0
      %p101 = por %p99, %p100
      %s102 = ssub.s32 %s26, %s33
      %p103 = scmp.eq.s32.totalorder %s102, 0
      %s105 = sadd.s32 %s104, 1
      %s106 = scalar_select %p103, %s104, %s105
      %p109 = pneg %p103
      %p110 = scmp.eq.s32.totalorder %s26, 1
      %p111 = por %p109, %p110
      %p112 = scmp.ne.s32.totalorder %s104, %s107
      %p113 = scmp.eq.s32.totalorder %s26, 0
      %p114 = por %p112, %p113
      %p115 = scmp.ne.s32.totalorder %s104, %s107
      %p116 = scmp.eq.s32.totalorder %s31, 1
      %p117 = por %p115, %p116
      %p118 = scmp.ne.s32.totalorder %s107, %s108
      %p119 = scmp.eq.s32.totalorder %s31, 0
      %p120 = por %p118, %p119
      %p121 = scmp.ne.s32.totalorder %s107, %s108
      %p122 = scmp.eq.s32.totalorder %s32, 1
      %p123 = por %p121, %p122
      %p125 = scmp.ne.s32.totalorder %s108, %s124
      %p126 = scmp.eq.s32.totalorder %s32, 0
      %p127 = por %p125, %p126
      %s128 = ssub.s32 %s26, %s33
      %p129 = scmp.eq.s32.totalorder %s128, 0
      %s131 = sadd.s32 %s130, 1
      %s132 = scalar_select %p129, %s130, %s131
      %p135 = pneg %p129
      %p136 = scmp.eq.s32.totalorder %s26, 1
      %p137 = por %p135, %p136
      %p138 = scmp.ne.s32.totalorder %s130, %s133
      %p139 = scmp.eq.s32.totalorder %s26, 0
      %p140 = por %p138, %p139
      %p141 = scmp.ne.s32.totalorder %s130, %s133
      %p142 = scmp.eq.s32.totalorder %s31, 1
      %p143 = por %p141, %p142
      %p144 = scmp.ne.s32.totalorder %s133, %s134
      %p145 = scmp.eq.s32.totalorder %s31, 0
      %p146 = por %p144, %p145
      %p147 = scmp.ne.s32.totalorder %s133, %s134
      %p148 = scmp.eq.s32.totalorder %s32, 1
      %p149 = por %p147, %p148
      %p151 = scmp.ne.s32.totalorder %s134, %s150
      %p152 = scmp.eq.s32.totalorder %s32, 0
      %p153 = por %p151, %p152
      %s154 = ssub.s32 %s26, %s33
      %p155 = scmp.eq.s32.totalorder %s154, 0
      %s157 = sadd.s32 %s156, 1
      %s158 = scalar_select %p155, %s156, %s157
      %p161 = pneg %p155
      %p162 = scmp.eq.s32.totalorder %s26, 1
      %p163 = por %p161, %p162
      %p164 = scmp.ne.s32.totalorder %s156, %s159
      %p165 = scmp.eq.s32.totalorder %s26, 0
      %p166 = por %p164, %p165
      %p167 = scmp.ne.s32.totalorder %s156, %s159
      %p168 = scmp.eq.s32.totalorder %s31, 1
      %p169 = por %p167, %p168
      %p170 = scmp.ne.s32.totalorder %s159, %s160
      %p171 = scmp.eq.s32.totalorder %s31, 0
      %p172 = por %p170, %p171
      %p173 = scmp.ne.s32.totalorder %s159, %s160
      %p174 = scmp.eq.s32.totalorder %s32, 1
      %p175 = por %p173, %p174
      %p177 = scmp.ne.s32.totalorder %s160, %s176
      %p178 = scmp.eq.s32.totalorder %s32, 0
      %p179 = por %p177, %p178
      %s180 = ssub.s32 %s26, %s33
      %p181 = scmp.eq.s32.totalorder %s180, 0
      %s183 = sadd.s32 %s182, 1
      %s184 = scalar_select %p181, %s182, %s183
      %p187 = pneg %p181
      %p188 = scmp.eq.s32.totalorder %s26, 1
      %p189 = por %p187, %p188
      %p190 = scmp.ne.s32.totalorder %s182, %s185
      %p191 = scmp.eq.s32.totalorder %s26, 0
      %p192 = por %p190, %p191
      %p193 = scmp.ne.s32.totalorder %s182, %s185
      %p194 = scmp.eq.s32.totalorder %s31, 1
      %p195 = por %p193, %p194
      %p196 = scmp.ne.s32.totalorder %s185, %s186
      %p197 = scmp.eq.s32.totalorder %s31, 0
      %p198 = por %p196, %p197
      %p199 = scmp.ne.s32.totalorder %s185, %s186
      %p200 = scmp.eq.s32.totalorder %s32, 1
      %p201 = por %p199, %p200
      %p203 = scmp.ne.s32.totalorder %s186, %s202
      %p204 = scmp.eq.s32.totalorder %s32, 0
      %p205 = por %p203, %p204
      %s206 = ssub.s32 %s26, %s33
      %p207 = scmp.eq.s32.totalorder %s206, 0
      %s209 = sadd.s32 %s208, 1
      %s210 = scalar_select %p207, %s208, %s209
      %p213 = pneg %p207
      %p214 = scmp.eq.s32.totalorder %s26, 1
      %p215 = por %p213, %p214
      %p216 = scmp.ne.s32.totalorder %s208, %s211
      %p217 = scmp.eq.s32.totalorder %s26, 0
      %p218 = por %p216, %p217
      %p219 = scmp.ne.s32.totalorder %s208, %s211
      %p220 = scmp.eq.s32.totalorder %s31, 1
      %p221 = por %p219, %p220
      %p222 = scmp.ne.s32.totalorder %s211, %s212
      %p223 = scmp.eq.s32.totalorder %s31, 0
      %p224 = por %p222, %p223
      %p225 = scmp.ne.s32.totalorder %s211, %s212
      %p226 = scmp.eq.s32.totalorder %s32, 1
      %p227 = por %p225, %p226
      %p229 = scmp.ne.s32.totalorder %s212, %s228
      %p230 = scmp.eq.s32.totalorder %s32, 0
      %p231 = por %p229, %p230
      %s232 = ssub.s32 %s26, %s33
      %p233 = scmp.eq.s32.totalorder %s232, 0
      %s235 = sadd.s32 %s234, 1
      %s236 = scalar_select %p233, %s234, %s235
      %p239 = pneg %p233
      %p240 = scmp.eq.s32.totalorder %s26, 1
      %p241 = por %p239, %p240
      %p242 = scmp.ne.s32.totalorder %s234, %s237
      %p243 = scmp.eq.s32.totalorder %s26, 0
      %p244 = por %p242, %p243
      %p245 = scmp.ne.s32.totalorder %s234, %s237
      %p246 = scmp.eq.s32.totalorder %s31, 1
      %p247 = por %p245, %p246
      %p248 = scmp.ne.s32.totalorder %s237, %s238
      %p249 = scmp.eq.s32.totalorder %s31, 0
      %p250 = por %p248, %p249
      %p251 = scmp.ne.s32.totalorder %s237, %s238
      %p252 = scmp.eq.s32.totalorder %s32, 1
      %p253 = por %p251, %p252
      %p255 = scmp.ne.s32.totalorder %s238, %s254
      %p256 = scmp.eq.s32.totalorder %s32, 0
      %p257 = por %p255, %p256
      %s258 = ssub.s32 %s26, %s33
      %p259 = scmp.eq.s32.totalorder %s258, 0
      %s261 = sadd.s32 %s260, 1
      %s262 = scalar_select %p259, %s260, %s261
      %p265 = pneg %p259
      %p266 = scmp.eq.s32.totalorder %s26, 1
      %p267 = por %p265, %p266
      %p268 = scmp.ne.s32.totalorder %s260, %s263
      %p269 = scmp.eq.s32.totalorder %s26, 0
      %p270 = por %p268, %p269
      %p271 = scmp.ne.s32.totalorder %s260, %s263
      %p272 = scmp.eq.s32.totalorder %s31, 1
      %p273 = por %p271, %p272
      %p274 = scmp.ne.s32.totalorder %s263, %s264
      %p275 = scmp.eq.s32.totalorder %s31, 0
      %p276 = por %p274, %p275
      %p277 = scmp.ne.s32.totalorder %s263, %s264
      %p278 = scmp.eq.s32.totalorder %s32, 1
      %p279 = por %p277, %p278
      %p281 = scmp.ne.s32.totalorder %s264, %s280
      %p282 = scmp.eq.s32.totalorder %s32, 0
      %p283 = por %p281, %p282
      %s284 = ssub.s32 %s26, %s33
      %p285 = scmp.eq.s32.totalorder %s284, 0
      %s287 = sadd.s32 %s286, 1
      %s288 = scalar_select %p285, %s286, %s287
      %p291 = pneg %p285
      %p292 = scmp.eq.s32.totalorder %s26, 1
      %p293 = por %p291, %p292
      %p294 = scmp.ne.s32.totalorder %s286, %s289
      %p295 = scmp.eq.s32.totalorder %s26, 0
      %p296 = por %p294, %p295
      %p297 = scmp.ne.s32.totalorder %s286, %s289
      %p298 = scmp.eq.s32.totalorder %s31, 1
      %p299 = por %p297, %p298
      %p300 = scmp.ne.s32.totalorder %s289, %s290
      %p301 = scmp.eq.s32.totalorder %s31, 0
      %p302 = por %p300, %p301
      %p303 = scmp.ne.s32.totalorder %s289, %s290
      %p304 = scmp.eq.s32.totalorder %s32, 1
      %p305 = por %p303, %p304
      %p307 = scmp.ne.s32.totalorder %s290, %s306
      %p308 = scmp.eq.s32.totalorder %s32, 0
      %p309 = por %p307, %p308
      %s310 = ssub.s32 %s26, %s33
      %p311 = scmp.eq.s32.totalorder %s310, 0
      %s313 = sadd.s32 %s312, 1
      %s314 = scalar_select %p311, %s312, %s313
      %p317 = pneg %p311
      %p318 = scmp.eq.s32.totalorder %s26, 1
      %p319 = por %p317, %p318
      %p320 = scmp.ne.s32.totalorder %s312, %s315
      %p321 = scmp.eq.s32.totalorder %s26, 0
      %p322 = por %p320, %p321
      %p323 = scmp.ne.s32.totalorder %s312, %s315
      %p324 = scmp.eq.s32.totalorder %s31, 1
      %p325 = por %p323, %p324
      %p326 = scmp.ne.s32.totalorder %s315, %s316
      %p327 = scmp.eq.s32.totalorder %s31, 0
      %p328 = por %p326, %p327
      %p329 = scmp.ne.s32.totalorder %s315, %s316
      %p330 = scmp.eq.s32.totalorder %s32, 1
      %p331 = por %p329, %p330
      %p333 = scmp.ne.s32.totalorder %s316, %s332
      %p334 = scmp.eq.s32.totalorder %s32, 0
      %p335 = por %p333, %p334
      %p336 = scmp.le.s32.totalorder 1, %s26
      %p337 = scmp.lt.s32.totalorder %s26, 3
      %p338 = pnand %p336, %p337
      %p339 = pneg %p338
      // Predicated region
      $region9: #{tpu_custom_call.1} parent=5 // pred_check
        _
      $region10: #{tpu_custom_call.1} parent=5 // pred_check_branch
        %341 = sbr.rel (%p338) target = $region12
      $region11: #{tpu_custom_call.1} parent=5 // pred_region
        %s342 = ssub.s32 %s26, 1
        // Predicated region
        $region13: #{tpu_custom_call.1} parent=11 // pred_check
          %p343 = pneg %p47
        $region14: #{tpu_custom_call.1} parent=11 // pred_check_branch
          %345 = sbr.rel (%p343) target = $region16
        $region15: #{tpu_custom_call.1} parent=11 // pred_region
          %s347 = ssub.s32 64, 64
          %348 = vsyncadd [#allocation4], %s347
          %s350 = sshll.u32 [#allocation3], 4
          %s351 = int_to_ptr.vmem [resolvable:$true] %s350
          %353 = dma.hbm_to_vmem [thread:$0]  %s0, 64, %s351, [#allocation4]
        $region16: #{tpu_custom_call.1} parent=11 // pred_fallthru
          _
        // Predicated region
        $region17: #{tpu_custom_call.1} parent=11 // pred_check
          %p354 = pneg %p68
        $region18: #{tpu_custom_call.1} parent=11 // pred_check_branch
          %356 = sbr.rel (%p354) target = $region20
        $region19: #{tpu_custom_call.1} parent=11 // pred_region
          %s358 = ssub.s32 128, 128
          %359 = vsyncadd [#allocation7], %s358
          %s361 = sshll.u32 [#allocation6], 4
          %s362 = int_to_ptr.vmem [resolvable:$true] %s361
          %364 = dma.hbm_to_vmem [thread:$0]  %s1, 128, %s362, [#allocation7]
        $region20: #{tpu_custom_call.1} parent=11 // pred_fallthru
          _
      $region12: #{tpu_custom_call.1} parent=5 // pred_fallthru
        _
      %p365 = scmp.lt.s32.totalorder %s26, 2
      // Predicated region
      $region21: #{tpu_custom_call.1} parent=5 // pred_check
        %p366 = pneg %p365
      $region22: #{tpu_custom_call.1} parent=5 // pred_check_branch
        %368 = sbr.rel (%p366) target = $region24
      $region23: #{tpu_custom_call.1} parent=5 // pred_region
        // Predicated region
        $region25: #{tpu_custom_call.1} parent=23 // pred_check
          %p369 = pneg %p88
        $region26: #{tpu_custom_call.1} parent=23 // pred_check_branch
          %371 = sbr.rel (%p369) target = $region28
        $region27: #{tpu_custom_call.1} parent=23 // pred_region
          %s372 = sand.u32 %s26, 1
          %s373 = scalar_lea.sflag [#allocation4], %s372
          %s374 = sand.u32 %s78, 1
          %s375 = smul.addr %s374, 4
          %s376 = scalar_lea.vmem [#allocation8], %s375
          %s378 = ssub.s32 64, 64
          %379 = vsyncadd %s373, %s378
          %s380 = smul.addr %s26, 64
          %s381 = scalar_lea.hbm %s2, %s380
          %s383 = sshll.u32 %s376, 4
          %s384 = int_to_ptr.vmem [resolvable:$true] %s383
          %386 = dma.hbm_to_vmem [thread:$0]  %s381, 64, %s384, %s373
        $region28: #{tpu_custom_call.1} parent=23 // pred_fallthru
          _
        // Predicated region
        $region29: #{tpu_custom_call.1} parent=23 // pred_check
          %p387 = pneg %p114
        $region30: #{tpu_custom_call.1} parent=23 // pred_check_branch
          %389 = sbr.rel (%p387) target = $region32
        $region31: #{tpu_custom_call.1} parent=23 // pred_region
          %s390 = sand.u32 %s26, 1
          %s391 = scalar_lea.sflag [#allocation4], %s390
          %s392 = sand.u32 %s104, 1
          %s393 = smul.addr %s392, 4
          %s394 = scalar_lea.vmem [#allocation9], %s393
          %s396 = ssub.s32 64, 64
          %397 = vsyncadd %s391, %s396
          %s398 = smul.addr %s26, 64
          %s399 = scalar_lea.hbm %s3, %s398
          %s401 = sshll.u32 %s394, 4
          %s402 = int_to_ptr.vmem [resolvable:$true] %s401
          %404 = dma.hbm_to_vmem [thread:$0]  %s399, 64, %s402, %s391
        $region32: #{tpu_custom_call.1} parent=23 // pred_fallthru
          _
        // Predicated region
        $region33: #{tpu_custom_call.1} parent=23 // pred_check
          %p405 = pneg %p140
        $region34: #{tpu_custom_call.1} parent=23 // pred_check_branch
          %407 = sbr.rel (%p405) target = $region36
        $region35: #{tpu_custom_call.1} parent=23 // pred_region
          %s408 = sand.u32 %s26, 1
          %s409 = scalar_lea.sflag [#allocation4], %s408
          %s410 = sand.u32 %s130, 1
          %s411 = smul.addr %s410, 320
          %s412 = scalar_lea.vmem [#allocation10], %s411
          %s414 = ssub.s32 5120, 5120
          %415 = vsyncadd %s409, %s414
          %s416 = smul.addr %s26, 80
          %s417 = smul.addr %s416, 64
          %s418 = scalar_lea.hbm %s4, %s417
          %s419 = sshll.u32 %s412, 4
          %s420 = int_to_ptr.vmem [resolvable:$true] %s419
          %425 = dma.hbm_to_vmem [thread:$0]  %s418, 5120, %s420, %s409, 320, 320, 20
        $region36: #{tpu_custom_call.1} parent=23 // pred_fallthru
          _
        // Predicated region
        $region37: #{tpu_custom_call.1} parent=23 // pred_check
          %p426 = pneg %p166
        $region38: #{tpu_custom_call.1} parent=23 // pred_check_branch
          %428 = sbr.rel (%p426) target = $region40
        $region39: #{tpu_custom_call.1} parent=23 // pred_region
          %s429 = sand.u32 %s26, 1
          %s430 = scalar_lea.sflag [#allocation4], %s429
          %s431 = sand.u32 %s156, 1
          %s432 = smul.addr %s431, 5
          %s433 = scalar_lea.vmem [#allocation11], %s432
          %s435 = ssub.s32 80, 80
          %436 = vsyncadd %s430, %s435
          %s437 = smul.addr %s26, 5
          %s438 = smul.addr %s437, 16
          %s439 = scalar_lea.hbm %s5, %s438
          %s441 = sshll.u32 %s433, 4
          %s442 = int_to_ptr.vmem [resolvable:$true] %s441
          %444 = dma.hbm_to_vmem [thread:$0]  %s439, 80, %s442, %s430
        $region40: #{tpu_custom_call.1} parent=23 // pred_fallthru
          _
        // Predicated region
        $region41: #{tpu_custom_call.1} parent=23 // pred_check
          %p445 = pneg %p192
        $region42: #{tpu_custom_call.1} parent=23 // pred_check_branch
          %447 = sbr.rel (%p445) target = $region44
        $region43: #{tpu_custom_call.1} parent=23 // pred_region
          %s448 = sand.u32 %s26, 1
          %s449 = scalar_lea.sflag [#allocation4], %s448
          %s450 = sand.u32 %s182, 1
          %s451 = smul.addr %s450, 192
          %s452 = scalar_lea.vmem [#allocation12], %s451
          %s454 = ssub.s32 3072, 3072
          %455 = vsyncadd %s449, %s454
          %s456 = smul.addr %s26, 48
          %s457 = smul.addr %s456, 64
          %s458 = scalar_lea.hbm %s6, %s457
          %s459 = sshll.u32 %s452, 4
          %s460 = int_to_ptr.vmem [resolvable:$true] %s459
          %465 = dma.hbm_to_vmem [thread:$0]  %s458, 3072, %s460, %s449, 192, 192, 12
        $region44: #{tpu_custom_call.1} parent=23 // pred_fallthru
          _
        // Predicated region
        $region45: #{tpu_custom_call.1} parent=23 // pred_check
          %p466 = pneg %p218
        $region46: #{tpu_custom_call.1} parent=23 // pred_check_branch
          %468 = sbr.rel (%p466) target = $region48
        $region47: #{tpu_custom_call.1} parent=23 // pred_region
          %p469 = scmp.lt.s32.totalorder %s26, 1
          %s470 = scalar_select %p469, %s26, 1
          %s471 = smul.addr %s470, 3
          %s472 = scalar_lea.vmem %s7, %s471
        $region48: #{tpu_custom_call.1} parent=23 // pred_fallthru
          _
        // Predicated region
        $region49: #{tpu_custom_call.1} parent=23 // pred_check
          %p473 = pneg %p244
        $region50: #{tpu_custom_call.1} parent=23 // pred_check_branch
          %475 = sbr.rel (%p473) target = $region52
        $region51: #{tpu_custom_call.1} parent=23 // pred_region
          %s476 = sand.u32 %s26, 1
          %s477 = scalar_lea.sflag [#allocation4], %s476
          %s478 = sand.u32 %s234, 1
          %s479 = smul.addr %s478, 384
          %s480 = scalar_lea.vmem [#allocation13], %s479
          %s482 = ssub.s32 6144, 6144
          %483 = vsyncadd %s477, %s482
          %s484 = smul.addr %s26, 96
          %s485 = smul.addr %s484, 64
          %s486 = scalar_lea.hbm %s8, %s485
          %s487 = sshll.u32 %s480, 4
          %s488 = int_to_ptr.vmem [resolvable:$true] %s487
          %493 = dma.hbm_to_vmem [thread:$0]  %s486, 6144, %s488, %s477, 192, 192, 12
        $region52: #{tpu_custom_call.1} parent=23 // pred_fallthru
          _
        // Predicated region
        $region53: #{tpu_custom_call.1} parent=23 // pred_check
          %p494 = pneg %p270
        $region54: #{tpu_custom_call.1} parent=23 // pred_check_branch
          %496 = sbr.rel (%p494) target = $region56
        $region55: #{tpu_custom_call.1} parent=23 // pred_region
          %p497 = scmp.lt.s32.totalorder %s26, 1
          %s498 = scalar_select %p497, %s26, 1
          %s499 = smul.addr %s498, 3
          %s500 = scalar_lea.vmem %s9, %s499
        $region56: #{tpu_custom_call.1} parent=23 // pred_fallthru
          _
      $region24: #{tpu_custom_call.1} parent=5 // pred_fallthru
        _
      %p501 = scmp.le.s32.totalorder 1, %s26
      %p502 = scmp.lt.s32.totalorder %s26, 3
      %p503 = pnand %p501, %p502
      %p504 = pneg %p503
      // Predicated region
      $region57: #{tpu_custom_call.1} parent=5 // pred_check
        _
      $region58: #{tpu_custom_call.1} parent=5 // pred_check_branch
        %506 = sbr.rel (%p503) target = $region60
      $region59: #{tpu_custom_call.1} parent=5 // pred_region
        %s507 = ssub.s32 %s26, 1
        // Predicated region
        $region61: #{tpu_custom_call.1} parent=59 // pred_check
          %p508 = pneg %p47
        $region62: #{tpu_custom_call.1} parent=59 // pred_check_branch
          %510 = sbr.rel (%p508) target = $region64
        $region63: #{tpu_custom_call.1} parent=59 // pred_region
          %511 = dma.done [#allocation4], 64
        $region64: #{tpu_custom_call.1} parent=59 // pred_fallthru
          _
        // Predicated region
        $region65: #{tpu_custom_call.1} parent=59 // pred_check
          %p512 = pneg %p68
        $region66: #{tpu_custom_call.1} parent=59 // pred_check_branch
          %514 = sbr.rel (%p512) target = $region68
        $region67: #{tpu_custom_call.1} parent=59 // pred_region
          %515 = dma.done [#allocation7], 128
        $region68: #{tpu_custom_call.1} parent=59 // pred_fallthru
          _
        %s516 = sand.u32 %s31, 1
        %s517 = scalar_lea.sflag [#allocation4], %s516
        %s518 = sand.u32 %s81, 1
        %s519 = smul.addr %s518, 4
        %s520 = scalar_lea.vmem [#allocation8], %s519
        // Predicated region
        $region69: #{tpu_custom_call.1} parent=59 // pred_check
          %p521 = pneg %p94
        $region70: #{tpu_custom_call.1} parent=59 // pred_check_branch
          %523 = sbr.rel (%p521) target = $region72
        $region71: #{tpu_custom_call.1} parent=59 // pred_region
          %524 = dma.done %s517, 64
        $region72: #{tpu_custom_call.1} parent=59 // pred_fallthru
          _
        %s525 = sand.u32 %s31, 1
        %s526 = scalar_lea.sflag [#allocation4], %s525
        %s527 = sand.u32 %s107, 1
        %s528 = smul.addr %s527, 4
        %s529 = scalar_lea.vmem [#allocation9], %s528
        // Predicated region
        $region73: #{tpu_custom_call.1} parent=59 // pred_check
          %p530 = pneg %p120
        $region74: #{tpu_custom_call.1} parent=59 // pred_check_branch
          %532 = sbr.rel (%p530) target = $region76
        $region75: #{tpu_custom_call.1} parent=59 // pred_region
          %533 = dma.done %s526, 64
        $region76: #{tpu_custom_call.1} parent=59 // pred_fallthru
          _
        %s534 = sand.u32 %s31, 1
        %s535 = scalar_lea.sflag [#allocation4], %s534
        %s536 = sand.u32 %s133, 1
        %s537 = smul.addr %s536, 320
        %s538 = scalar_lea.vmem [#allocation10], %s537
        // Predicated region
        $region77: #{tpu_custom_call.1} parent=59 // pred_check
          %p539 = pneg %p146
        $region78: #{tpu_custom_call.1} parent=59 // pred_check_branch
          %541 = sbr.rel (%p539) target = $region80
        $region79: #{tpu_custom_call.1} parent=59 // pred_region
          %542 = dma.done %s535, 5120
        $region80: #{tpu_custom_call.1} parent=59 // pred_fallthru
          _
        %s543 = sand.u32 %s31, 1
        %s544 = scalar_lea.sflag [#allocation4], %s543
        %s545 = sand.u32 %s159, 1
        %s546 = smul.addr %s545, 5
        %s547 = scalar_lea.vmem [#allocation11], %s546
        // Predicated region
        $region81: #{tpu_custom_call.1} parent=59 // pred_check
          %p548 = pneg %p172
        $region82: #{tpu_custom_call.1} parent=59 // pred_check_branch
          %550 = sbr.rel (%p548) target = $region84
        $region83: #{tpu_custom_call.1} parent=59 // pred_region
          %551 = dma.done %s544, 80
        $region84: #{tpu_custom_call.1} parent=59 // pred_fallthru
          _
        %s552 = sand.u32 %s31, 1
        %s553 = scalar_lea.sflag [#allocation4], %s552
        %s554 = sand.u32 %s185, 1
        %s555 = smul.addr %s554, 192
        %s556 = scalar_lea.vmem [#allocation12], %s555
        // Predicated region
        $region85: #{tpu_custom_call.1} parent=59 // pred_check
          %p557 = pneg %p198
        $region86: #{tpu_custom_call.1} parent=59 // pred_check_branch
          %559 = sbr.rel (%p557) target = $region88
        $region87: #{tpu_custom_call.1} parent=59 // pred_region
          %560 = dma.done %s553, 3072
        $region88: #{tpu_custom_call.1} parent=59 // pred_fallthru
          _
        %s561 = sand.u32 %s31, 1
        %s562 = scalar_lea.sflag [#allocation4], %s561
        %s563 = sand.u32 %s237, 1
        %s564 = smul.addr %s563, 384
        %s565 = scalar_lea.vmem [#allocation13], %s564
        // Predicated region
        $region89: #{tpu_custom_call.1} parent=59 // pred_check
          %p566 = pneg %p250
        $region90: #{tpu_custom_call.1} parent=59 // pred_check_branch
          %568 = sbr.rel (%p566) target = $region92
        $region91: #{tpu_custom_call.1} parent=59 // pred_region
          %569 = dma.done %s562, 6144
        $region92: #{tpu_custom_call.1} parent=59 // pred_fallthru
          _
        %p570 = pneg %p47
        %p571 = pneg %p44
        %p572 = pneg %p68
        %p573 = pneg %p65
        %s574 = sand.u32 %s31, 1
        %s575 = scalar_lea.sflag [#allocation4], %s574
        %s576 = sand.u32 %s81, 1
        %s577 = smul.addr %s576, 4
        %s578 = scalar_lea.vmem [#allocation8], %s577
        %p579 = pneg %p94
        %p580 = pneg %p91
        %s581 = sand.u32 %s31, 1
        %s582 = scalar_lea.sflag [#allocation4], %s581
        %s583 = sand.u32 %s107, 1
        %s584 = smul.addr %s583, 4
        %s585 = scalar_lea.vmem [#allocation9], %s584
        %p586 = pneg %p120
        %p587 = pneg %p117
        %s588 = sand.u32 %s31, 1
        %s589 = scalar_lea.sflag [#allocation4], %s588
        %s590 = sand.u32 %s133, 1
        %s591 = smul.addr %s590, 320
        %s592 = scalar_lea.vmem [#allocation10], %s591
        %p593 = pneg %p146
        %p594 = pneg %p143
        %s595 = sand.u32 %s31, 1
        %s596 = scalar_lea.sflag [#allocation4], %s595
        %s597 = sand.u32 %s159, 1
        %s598 = smul.addr %s597, 5
        %s599 = scalar_lea.vmem [#allocation11], %s598
        %p600 = pneg %p172
        %p601 = pneg %p169
        %s602 = sand.u32 %s31, 1
        %s603 = scalar_lea.sflag [#allocation4], %s602
        %s604 = sand.u32 %s185, 1
        %s605 = smul.addr %s604, 192
        %s606 = scalar_lea.vmem [#allocation12], %s605
        %p607 = pneg %p198
        %p608 = pneg %p195
        %p609 = scmp.lt.s32.totalorder %s31, 1
        %s610 = scalar_select %p609, %s31, 1
        %s611 = smul.addr %s610, 3
        %s612 = scalar_lea.vmem %s7, %s611
        %p613 = pneg %p224
        %p614 = pneg %p221
        %s615 = sand.u32 %s31, 1
        %s616 = scalar_lea.sflag [#allocation4], %s615
        %s617 = sand.u32 %s237, 1
        %s618 = smul.addr %s617, 384
        %s619 = scalar_lea.vmem [#allocation13], %s618
        %p620 = pneg %p250
        %p621 = pneg %p247
        %p622 = scmp.lt.s32.totalorder %s31, 1
        %s623 = scalar_select %p622, %s31, 1
        %s624 = smul.addr %s623, 3
        %s625 = scalar_lea.vmem %s9, %s624
        %p626 = pneg %p276
        %p627 = pneg %p273
        %p628 = pneg %p302
        %p629 = pneg %p299
        %s630 = sand.u32 %s289, 1
        %s631 = scalar_lea.sflag [#allocation5], %s630
        %s632 = sand.u32 %s289, 1
        %s633 = smul.addr %s632, 4
        %s634 = scalar_lea.vmem [#allocation14], %s633
        %p635 = pneg %p328
        %p636 = pneg %p325
        %s637 = sand.u32 %s315, 1
        %s638 = scalar_lea.sflag [#allocation16], %s637
        %s639 = sand.u32 %s315, 1
        %s640 = smul.addr %s639, 4
        %s641 = scalar_lea.vmem [#allocation15], %s640
        %p642 = scmp.lt.s32.totalorder %s31, 1
        %s643 = scalar_select %p642, %s31, 1
        %s644 = smul.addr %s643, 3
        %s645 = scalar_lea.vmem %s7, %s644
        %p646 = scmp.lt.s32.totalorder %s31, 1
        %s647 = scalar_select %p646, %s31, 1
        %s648 = smul.addr %s647, 3
        %s649 = scalar_lea.vmem %s9, %s648
        %p651 = scmp.eq.s32.totalorder %s31, 0
        // Predicated region
        $region93: #{tpu_custom_call.1} parent=59 // pred_check
          %p652 = pneg %p651
        $region94: #{tpu_custom_call.1} parent=59 // pred_check_branch
          %654 = sbr.rel (%p652) target = $region96
        $region95: #{tpu_custom_call.1} parent=59 // pred_region
          %v655 = vld [vmem:[#allocation3] sm:$0xf]
          %656 = vst [vmem:[#allocation2] sm:$0xf] %v655
        $region96: #{tpu_custom_call.1} parent=59 // pred_fallthru
          _
        %v657 = vld [vmem:[#allocation2] sm:$0xf]
        %v658 = vld [vmem:[%s520] sm:$0xf]
        %v659 = vld [vmem:[#allocation6] sm:$0xff]
        %v660 = vld [vmem:[%s529] sm:$0xf]
        %v661 = vpack.c.bf16 %v657, %v657
        %v662 = vld [vmem:[%s538] sm:$0xff]
        %v663 = vld [vmem:[%s538 + $0x8] sm:$0xff]
        %v664 = vld [vmem:[%s538 + $0x10] sm:$0xf]
        %v665 = vld [vmem:[%s538 + $0x14] sm:$0xff]
        %v666 = vld [vmem:[%s538 + $0x1c] sm:$0xff]
        %v667 = vld [vmem:[%s538 + $0x24] sm:$0xf]
        %v668 = vld [vmem:[%s538 + $0x28] sm:$0xff]
        %v669 = vld [vmem:[%s538 + $0x30] sm:$0xff]
        %v670 = vld [vmem:[%s538 + $0x38] sm:$0xf]
        %v671 = vld [vmem:[%s538 + $0x3c] sm:$0xff]
        %v672 = vld [vmem:[%s538 + $0x44] sm:$0xff]
        %v673 = vld [vmem:[%s538 + $0x4c] sm:$0xf]
        %v674 = vld [vmem:[%s538 + $0x50] sm:$0xff]
        %v675 = vld [vmem:[%s538 + $0x58] sm:$0xff]
        %v676 = vld [vmem:[%s538 + $0x60] sm:$0xf]
        %v677 = vld [vmem:[%s538 + $0x64] sm:$0xff]
        %v678 = vld [vmem:[%s538 + $0x6c] sm:$0xff]
        %v679 = vld [vmem:[%s538 + $0x74] sm:$0xf]
        %v680 = vld [vmem:[%s538 + $0x78] sm:$0xff]
        %v681 = vld [vmem:[%s538 + $0x80] sm:$0xff]
        %v682 = vld [vmem:[%s538 + $0x88] sm:$0xf]
        %v683 = vld [vmem:[%s538 + $0x8c] sm:$0xff]
        %v684 = vld [vmem:[%s538 + $0x94] sm:$0xff]
        %v685 = vld [vmem:[%s538 + $0x9c] sm:$0xf]
        %v686 = vld [vmem:[%s538 + $0xa0] sm:$0xff]
        %v687 = vld [vmem:[%s538 + $0xa8] sm:$0xff]
        %v688 = vld [vmem:[%s538 + $0xb0] sm:$0xf]
        %v689 = vld [vmem:[%s538 + $0xb4] sm:$0xff]
        %v690 = vld [vmem:[%s538 + $0xbc] sm:$0xff]
        %v691 = vld [vmem:[%s538 + $0xc4] sm:$0xf]
        %v692 = vld [vmem:[%s538 + $0xc8] sm:$0xff]
        %v693 = vld [vmem:[%s538 + $0xd0] sm:$0xff]
        %v694 = vld [vmem:[%s538 + $0xd8] sm:$0xf]
        %v695 = vld [vmem:[%s538 + $0xdc] sm:$0xff]
        %v696 = vld [vmem:[%s538 + $0xe4] sm:$0xff]
        %v697 = vld [vmem:[%s538 + $0xec] sm:$0xf]
        %v698 = vld [vmem:[%s538 + $0xf0] sm:$0xff]
        %v699 = vld [vmem:[%s538 + $0xf8] sm:$0xff]
        %v700 = vld [vmem:[%s538 + $0x100] sm:$0xf]
        %v701 = vld [vmem:[%s538 + $0x104] sm:$0xff]
        %v702 = vld [vmem:[%s538 + $0x10c] sm:$0xff]
        %v703 = vld [vmem:[%s538 + $0x114] sm:$0xf]
        %v704 = vld [vmem:[%s538 + $0x118] sm:$0xff]
        %v705 = vld [vmem:[%s538 + $0x120] sm:$0xff]
        %v706 = vld [vmem:[%s538 + $0x128] sm:$0xf]
        %v707 = vld [vmem:[%s538 + $0x12c] sm:$0xff]
        %v708 = vld [vmem:[%s538 + $0x134] sm:$0xff]
        %v709 = vld [vmem:[%s538 + $0x13c] sm:$0xf]
        %v710 = vld [vmem:[%s547] sm:$0x1f]
        %v712 = vlaneseq
        %v713 = vshrl.u32 %v712, 7
        %v714 = vsub.s32 0, %v713
        %v715 = vrot.slane %v710, %v714
        %v716 = vlaneseq
        %v717 = vshrl.u32 %v716, 7
        %v718 = vsub.s32 1, %v717
        %v719 = vrot.slane %v710, %v718
        %v720 = vlaneseq
        %v721 = vshrl.u32 %v720, 7
        %v722 = vsub.s32 2, %v721
        %v723 = vrot.slane %v710, %v722
        %v724 = vlaneseq
        %v725 = vshrl.u32 %v724, 7
        %v726 = vsub.s32 3, %v725
        %v727 = vrot.slane %v710, %v726
        %v728 = vlaneseq
        %v729 = vshrl.u32 %v728, 7
        %v730 = vsub.s32 4, %v729
        %v731 = vrot.slane %v710, %v730
        %v785 = vunpack.c.l.b16 %v662
        %v786 = vunpack.c.h.b16 %v662
        %v787 = vunpack.c.l.b16 %v663
        %v788 = vunpack.c.h.b16 %v663
        %v789 = vunpack.c.l.b16 %v664
        %v790 = vunpack.c.l.b16 %v665
        %v791 = vunpack.c.h.b16 %v665
        %v792 = vunpack.c.l.b16 %v666
        %v793 = vunpack.c.h.b16 %v666
        %v794 = vunpack.c.l.b16 %v667
        %v795 = vunpack.c.l.b16 %v668
        %v796 = vunpack.c.h.b16 %v668
        %v797 = vunpack.c.l.b16 %v669
        %v798 = vunpack.c.h.b16 %v669
        %v799 = vunpack.c.l.b16 %v670
        %v800 = vunpack.c.l.b16 %v671
        %v801 = vunpack.c.h.b16 %v671
        %v802 = vunpack.c.l.b16 %v672
        %v803 = vunpack.c.h.b16 %v672
        %v804 = vunpack.c.l.b16 %v673
        %v805 = vunpack.c.l.b16 %v674
        %v806 = vunpack.c.h.b16 %v674
        %v807 = vunpack.c.l.b16 %v675
        %v808 = vunpack.c.h.b16 %v675
        %v809 = vunpack.c.l.b16 %v676
        %v810 = vunpack.c.l.b16 %v677
        %v811 = vunpack.c.h.b16 %v677
        %v812 = vunpack.c.l.b16 %v678
        %v813 = vunpack.c.h.b16 %v678
        %v814 = vunpack.c.l.b16 %v679
        %v815 = vunpack.c.l.b16 %v680
        %v816 = vunpack.c.h.b16 %v680
        %v817 = vunpack.c.l.b16 %v681
        %v818 = vunpack.c.h.b16 %v681
        %v819 = vunpack.c.l.b16 %v682
        %v820 = vunpack.c.l.b16 %v683
        %v821 = vunpack.c.h.b16 %v683
        %v822 = vunpack.c.l.b16 %v684
        %v823 = vunpack.c.h.b16 %v684
        %v824 = vunpack.c.l.b16 %v685
        %v825 = vunpack.c.l.b16 %v686
        %v826 = vunpack.c.h.b16 %v686
        %v827 = vunpack.c.l.b16 %v687
        %v828 = vunpack.c.h.b16 %v687
        %v829 = vunpack.c.l.b16 %v688
        %v830 = vunpack.c.l.b16 %v689
        %v831 = vunpack.c.h.b16 %v689
        %v832 = vunpack.c.l.b16 %v690
        %v833 = vunpack.c.h.b16 %v690
        %v834 = vunpack.c.l.b16 %v691
        %v835 = vunpack.c.l.b16 %v692
        %v836 = vunpack.c.h.b16 %v692
        %v837 = vunpack.c.l.b16 %v693
        %v838 = vunpack.c.h.b16 %v693
        %v839 = vunpack.c.l.b16 %v694
        %v840 = vunpack.c.l.b16 %v695
        %v841 = vunpack.c.h.b16 %v695
        %v842 = vunpack.c.l.b16 %v696
        %v843 = vunpack.c.h.b16 %v696
        %v844 = vunpack.c.l.b16 %v697
        %v845 = vunpack.c.l.b16 %v698
        %v846 = vunpack.c.h.b16 %v698
        %v847 = vunpack.c.l.b16 %v699
        %v848 = vunpack.c.h.b16 %v699
        %v849 = vunpack.c.l.b16 %v700
        %v850 = vunpack.c.l.b16 %v701
        %v851 = vunpack.c.h.b16 %v701
        %v852 = vunpack.c.l.b16 %v702
        %v853 = vunpack.c.h.b16 %v702
        %v854 = vunpack.c.l.b16 %v703
        %v855 = vunpack.c.l.b16 %v704
        %v856 = vunpack.c.h.b16 %v704
        %v857 = vunpack.c.l.b16 %v705
        %v858 = vunpack.c.h.b16 %v705
        %v859 = vunpack.c.l.b16 %v706
        %v860 = vunpack.c.l.b16 %v707
        %v861 = vunpack.c.h.b16 %v707
        %v862 = vunpack.c.l.b16 %v708
        %v863 = vunpack.c.h.b16 %v708
        %v864 = vunpack.c.l.b16 %v709
        %v865 = vpack.c.b16 %v790, %v785
        %v866 = vpack.c.b16 %v791, %v786
        %v867 = vpack.c.b16 %v792, %v787
        %v868 = vpack.c.b16 %v793, %v788
        %v869 = vpack.c.b16 %v794, %v789
        %v870 = vpack.c.b16 %v800, %v795
        %v871 = vpack.c.b16 %v801, %v796
        %v872 = vpack.c.b16 %v802, %v797
        %v873 = vpack.c.b16 %v803, %v798
        %v874 = vpack.c.b16 %v804, %v799
        %v875 = vpack.c.b16 %v810, %v805
        %v876 = vpack.c.b16 %v811, %v806
        %v877 = vpack.c.b16 %v812, %v807
        %v878 = vpack.c.b16 %v813, %v808
        %v879 = vpack.c.b16 %v814, %v809
        %v880 = vpack.c.b16 %v820, %v815
        %v881 = vpack.c.b16 %v821, %v816
        %v882 = vpack.c.b16 %v822, %v817
        %v883 = vpack.c.b16 %v823, %v818
        %v884 = vpack.c.b16 %v824, %v819
        %v885 = vpack.c.b16 %v830, %v825
        %v886 = vpack.c.b16 %v831, %v826
        %v887 = vpack.c.b16 %v832, %v827
        %v888 = vpack.c.b16 %v833, %v828
        %v889 = vpack.c.b16 %v834, %v829
        %v890 = vpack.c.b16 %v840, %v835
        %v891 = vpack.c.b16 %v841, %v836
        %v892 = vpack.c.b16 %v842, %v837
        %v893 = vpack.c.b16 %v843, %v838
        %v894 = vpack.c.b16 %v844, %v839
        %v895 = vpack.c.b16 %v850, %v845
        %v896 = vpack.c.b16 %v851, %v846
        %v897 = vpack.c.b16 %v852, %v847
        %v898 = vpack.c.b16 %v853, %v848
        %v899 = vpack.c.b16 %v854, %v849
        %v900 = vpack.c.b16 %v860, %v855
        %v901 = vpack.c.b16 %v861, %v856
        %v902 = vpack.c.b16 %v862, %v857
        %v903 = vpack.c.b16 %v863, %v858
        %v904 = vpack.c.b16 %v864, %v859
        %945 = vmatprep.subr.bf16.mxu0 %v901
        %946 = vmatpush1.bf16.msra.mxu0 %v900
        %947 = vmatprep.subr.bf16.mxu0 %v896
        %948 = vmatpush1.bf16.msra.mxu0 %v895
        %949 = vmatprep.subr.bf16.mxu0 %v891
        %950 = vmatpush1.bf16.msra.mxu0 %v890
        %951 = vmatprep.subr.bf16.mxu0 %v886
        %952 = vmatpush1.bf16.msra.mxu0 %v885
        %953 = vmatprep.subr.bf16.mxu0 %v881
        %954 = vmatpush1.bf16.msra.mxu0 %v880
        %955 = vmatprep.subr.bf16.mxu0 %v876
        %956 = vmatpush1.bf16.msra.mxu0 %v875
        %957 = vmatprep.subr.bf16.mxu0 %v871
        %958 = vmatpush1.bf16.msra.mxu0 %v870
        %959 = vmatprep.subr.bf16.mxu0 %v866
        %960 = vmatpush1.bf16.msra.mxu0 %v865
        %961 = vmatprep.subr.bf16.mxu0 0
        %962 = vmatpush2.bf16.msra.mxu0 0
        %963 = vmatprep.subr.bf16.mxu0 0
        %964 = vmatpush2.bf16.msra.mxu0 0
        %965 = vmatprep.subr.bf16.mxu0 0
        %966 = vmatpush2.bf16.msra.mxu0 0
        %967 = vmatprep.subr.bf16.mxu0 0
        %968 = vmatpush2.bf16.msra.mxu0 0
        %969 = vmatprep.subr.bf16.mxu0 0
        %970 = vmatpush2.bf16.msra.mxu0 0
        %971 = vmatprep.subr.bf16.mxu0 0
        %972 = vmatpush2.bf16.msra.mxu0 0
        %973 = vmatprep.subr.bf16.mxu0 0
        %974 = vmatpush2.bf16.msra.mxu0 0
        %975 = vmatprep.subr.bf16.mxu0 0
        %976 = vmatpush2.bf16.msra.mxu0 0
        %977 = vmatprep.mubr.bf16.mxu0 0
        %978 = vmatmul.mubr.bf16.gmra.mxu0 %v661
        %v979 = vpop.f32.mrf.mxu0
        %v980 = vadd.f32 %v715, %v979
        %v981 = vpop.f32.mrf.mxu0
        %v982 = vadd.f32 %v719, %v981
        %v983 = vpop.f32.mrf.mxu0
        %v984 = vpop.f32.mrf.mxu0
        %985 = vdwg.mxu0
        %986 = vmatprep.subr.bf16.mxu0 %v903
        %987 = vmatpush1.bf16.msra.mxu0 %v902
        %988 = vmatprep.subr.bf16.mxu0 %v898
        %989 = vmatpush1.bf16.msra.mxu0 %v897
        %990 = vmatprep.subr.bf16.mxu0 %v893
        %991 = vmatpush1.bf16.msra.mxu0 %v892
        %992 = vmatprep.subr.bf16.mxu0 %v888
        %993 = vmatpush1.bf16.msra.mxu0 %v887
        %994 = vmatprep.subr.bf16.mxu0 %v883
        %995 = vmatpush1.bf16.msra.mxu0 %v882
        %996 = vmatprep.subr.bf16.mxu0 %v878
        %997 = vmatpush1.bf16.msra.mxu0 %v877
        %998 = vmatprep.subr.bf16.mxu0 %v873
        %999 = vmatpush1.bf16.msra.mxu0 %v872
        %1000 = vmatprep.subr.bf16.mxu0 %v868
        %1001 = vmatpush1.bf16.msra.mxu0 %v867
        %1002 = vmatprep.subr.bf16.mxu0 0
        %1003 = vmatpush2.bf16.msra.mxu0 0
        %1004 = vmatprep.subr.bf16.mxu0 0
        %1005 = vmatpush2.bf16.msra.mxu0 0
        %1006 = vmatprep.subr.bf16.mxu0 0
        %1007 = vmatpush2.bf16.msra.mxu0 0
        %1008 = vmatprep.subr.bf16.mxu0 0
        %1009 = vmatpush2.bf16.msra.mxu0 0
        %1010 = vmatprep.subr.bf16.mxu0 0
        %1011 = vmatpush2.bf16.msra.mxu0 0
        %1012 = vmatprep.subr.bf16.mxu0 0
        %1013 = vmatpush2.bf16.msra.mxu0 0
        %1014 = vmatprep.subr.bf16.mxu0 0
        %1015 = vmatpush2.bf16.msra.mxu0 0
        %1016 = vmatprep.subr.bf16.mxu0 0
        %1017 = vmatpush2.bf16.msra.mxu0 0
        %1018 = vmatprep.mubr.bf16.mxu0 0
        %1019 = vmatmul.mubr.bf16.gmra.mxu0 %v661
        %v1020 = vpop.f32.mrf.mxu0
        %v1021 = vadd.f32 %v723, %v1020
        %v1022 = vpop.f32.mrf.mxu0
        %v1023 = vadd.f32 %v727, %v1022
        %v1024 = vpop.f32.mrf.mxu0
        %v1025 = vpop.f32.mrf.mxu0
        %1026 = vdwg.mxu0
        %1027 = vmatprep.subr.bf16.mxu0 0
        %1028 = vmatpush1.bf16.msra.mxu0 %v904
        %1029 = vmatprep.subr.bf16.mxu0 0
        %1030 = vmatpush1.bf16.msra.mxu0 %v899
        %1031 = vmatprep.subr.bf16.mxu0 0
        %1032 = vmatpush1.bf16.msra.mxu0 %v894
        %1033 = vmatprep.subr.bf16.mxu0 0
        %1034 = vmatpush1.bf16.msra.mxu0 %v889
        %1035 = vmatprep.subr.bf16.mxu0 0
        %1036 = vmatpush1.bf16.msra.mxu0 %v884
        %1037 = vmatprep.subr.bf16.mxu0 0
        %1038 = vmatpush1.bf16.msra.mxu0 %v879
        %1039 = vmatprep.subr.bf16.mxu0 0
        %1040 = vmatpush1.bf16.msra.mxu0 %v874
        %1041 = vmatprep.subr.bf16.mxu0 0
        %1042 = vmatpush1.bf16.msra.mxu0 %v869
        %1043 = vmatprep.subr.bf16.mxu0 0
        %1044 = vmatpush2.bf16.msra.mxu0 0
        %1045 = vmatprep.subr.bf16.mxu0 0
        %1046 = vmatpush2.bf16.msra.mxu0 0
        %1047 = vmatprep.subr.bf16.mxu0 0
        %1048 = vmatpush2.bf16.msra.mxu0 0
        %1049 = vmatprep.subr.bf16.mxu0 0
        %1050 = vmatpush2.bf16.msra.mxu0 0
        %1051 = vmatprep.subr.bf16.mxu0 0
        %1052 = vmatpush2.bf16.msra.mxu0 0
        %1053 = vmatprep.subr.bf16.mxu0 0
        %1054 = vmatpush2.bf16.msra.mxu0 0
        %1055 = vmatprep.subr.bf16.mxu0 0
        %1056 = vmatpush2.bf16.msra.mxu0 0
        %1057 = vmatprep.subr.bf16.mxu0 0
        %1058 = vmatpush2.bf16.msra.mxu0 0
        %1059 = vmatprep.mubr.bf16.mxu0 0
        %1060 = vmatmul.mubr.bf16.gmra.mxu0 %v661
        %v1061 = vpop.f32.mrf.mxu0
        %v1062 = vadd.f32 %v731, %v1061
        %v1063 = vpop.f32.mrf.mxu0
        %v1064 = vpop.f32.mrf.mxu0
        %v1065 = vpop.f32.mrf.mxu0
        %1066 = vdwg.mxu0
        %v1067 = vpack.c.bf16 %v658, %v658
        %v1068 = vld [vmem:[%s556] sm:$0xff]
        %v1069 = vld [vmem:[%s556 + $0x8] sm:$0xf]
        %v1070 = vld [vmem:[%s556 + $0xc] sm:$0xff]
        %v1071 = vld [vmem:[%s556 + $0x14] sm:$0xf]
        %v1072 = vld [vmem:[%s556 + $0x18] sm:$0xff]
        %v1073 = vld [vmem:[%s556 + $0x20] sm:$0xf]
        %v1074 = vld [vmem:[%s556 + $0x24] sm:$0xff]
        %v1075 = vld [vmem:[%s556 + $0x2c] sm:$0xf]
        %v1076 = vld [vmem:[%s556 + $0x30] sm:$0xff]
        %v1077 = vld [vmem:[%s556 + $0x38] sm:$0xf]
        %v1078 = vld [vmem:[%s556 + $0x3c] sm:$0xff]
        %v1079 = vld [vmem:[%s556 + $0x44] sm:$0xf]
        %v1080 = vld [vmem:[%s556 + $0x48] sm:$0xff]
        %v1081 = vld [vmem:[%s556 + $0x50] sm:$0xf]
        %v1082 = vld [vmem:[%s556 + $0x54] sm:$0xff]
        %v1083 = vld [vmem:[%s556 + $0x5c] sm:$0xf]
        %v1084 = vld [vmem:[%s556 + $0x60] sm:$0xff]
        %v1085 = vld [vmem:[%s556 + $0x68] sm:$0xf]
        %v1086 = vld [vmem:[%s556 + $0x6c] sm:$0xff]
        %v1087 = vld [vmem:[%s556 + $0x74] sm:$0xf]
        %v1088 = vld [vmem:[%s556 + $0x78] sm:$0xff]
        %v1089 = vld [vmem:[%s556 + $0x80] sm:$0xf]
        %v1090 = vld [vmem:[%s556 + $0x84] sm:$0xff]
        %v1091 = vld [vmem:[%s556 + $0x8c] sm:$0xf]
        %v1092 = vld [vmem:[%s556 + $0x90] sm:$0xff]
        %v1093 = vld [vmem:[%s556 + $0x98] sm:$0xf]
        %v1094 = vld [vmem:[%s556 + $0x9c] sm:$0xff]
        %v1095 = vld [vmem:[%s556 + $0xa4] sm:$0xf]
        %v1096 = vld [vmem:[%s556 + $0xa8] sm:$0xff]
        %v1097 = vld [vmem:[%s556 + $0xb0] sm:$0xf]
        %v1098 = vld [vmem:[%s556 + $0xb4] sm:$0xff]
        %v1099 = vld [vmem:[%s556 + $0xbc] sm:$0xf]
        %v1100 = vld [vmem:[%s645] sm:$0x7]
        %v1102 = vlaneseq
        %v1103 = vshrl.u32 %v1102, 7
        %v1104 = vsub.s32 0, %v1103
        %v1105 = vrot.slane %v1100, %v1104
        %v1106 = vlaneseq
        %v1107 = vshrl.u32 %v1106, 7
        %v1108 = vsub.s32 1, %v1107
        %v1109 = vrot.slane %v1100, %v1108
        %v1110 = vlaneseq
        %v1111 = vshrl.u32 %v1110, 7
        %v1112 = vsub.s32 2, %v1111
        %v1113 = vrot.slane %v1100, %v1112
        %v1149 = vunpack.c.l.b16 %v1068
        %v1150 = vunpack.c.h.b16 %v1068
        %v1151 = vunpack.c.l.b16 %v1069
        %v1152 = vunpack.c.l.b16 %v1070
        %v1153 = vunpack.c.h.b16 %v1070
        %v1154 = vunpack.c.l.b16 %v1071
        %v1155 = vunpack.c.l.b16 %v1072
        %v1156 = vunpack.c.h.b16 %v1072
        %v1157 = vunpack.c.l.b16 %v1073
        %v1158 = vunpack.c.l.b16 %v1074
        %v1159 = vunpack.c.h.b16 %v1074
        %v1160 = vunpack.c.l.b16 %v1075
        %v1161 = vunpack.c.l.b16 %v1076
        %v1162 = vunpack.c.h.b16 %v1076
        %v1163 = vunpack.c.l.b16 %v1077
        %v1164 = vunpack.c.l.b16 %v1078
        %v1165 = vunpack.c.h.b16 %v1078
        %v1166 = vunpack.c.l.b16 %v1079
        %v1167 = vunpack.c.l.b16 %v1080
        %v1168 = vunpack.c.h.b16 %v1080
        %v1169 = vunpack.c.l.b16 %v1081
        %v1170 = vunpack.c.l.b16 %v1082
        %v1171 = vunpack.c.h.b16 %v1082
        %v1172 = vunpack.c.l.b16 %v1083
        %v1173 = vunpack.c.l.b16 %v1084
        %v1174 = vunpack.c.h.b16 %v1084
        %v1175 = vunpack.c.l.b16 %v1085
        %v1176 = vunpack.c.l.b16 %v1086
        %v1177 = vunpack.c.h.b16 %v1086
        %v1178 = vunpack.c.l.b16 %v1087
        %v1179 = vunpack.c.l.b16 %v1088
        %v1180 = vunpack.c.h.b16 %v1088
        %v1181 = vunpack.c.l.b16 %v1089
        %v1182 = vunpack.c.l.b16 %v1090
        %v1183 = vunpack.c.h.b16 %v1090
        %v1184 = vunpack.c.l.b16 %v1091
        %v1185 = vunpack.c.l.b16 %v1092
        %v1186 = vunpack.c.h.b16 %v1092
        %v1187 = vunpack.c.l.b16 %v1093
        %v1188 = vunpack.c.l.b16 %v1094
        %v1189 = vunpack.c.h.b16 %v1094
        %v1190 = vunpack.c.l.b16 %v1095
        %v1191 = vunpack.c.l.b16 %v1096
        %v1192 = vunpack.c.h.b16 %v1096
        %v1193 = vunpack.c.l.b16 %v1097
        %v1194 = vunpack.c.l.b16 %v1098
        %v1195 = vunpack.c.h.b16 %v1098
        %v1196 = vunpack.c.l.b16 %v1099
        %v1197 = vpack.c.b16 %v1152, %v1149
        %v1198 = vpack.c.b16 %v1153, %v1150
        %v1199 = vpack.c.b16 %v1154, %v1151
        %v1200 = vpack.c.b16 %v1158, %v1155
        %v1201 = vpack.c.b16 %v1159, %v1156
        %v1202 = vpack.c.b16 %v1160, %v1157
        %v1203 = vpack.c.b16 %v1164, %v1161
        %v1204 = vpack.c.b16 %v1165, %v1162
        %v1205 = vpack.c.b16 %v1166, %v1163
        %v1206 = vpack.c.b16 %v1170, %v1167
        %v1207 = vpack.c.b16 %v1171, %v1168
        %v1208 = vpack.c.b16 %v1172, %v1169
        %v1209 = vpack.c.b16 %v1176, %v1173
        %v1210 = vpack.c.b16 %v1177, %v1174
        %v1211 = vpack.c.b16 %v1178, %v1175
        %v1212 = vpack.c.b16 %v1182, %v1179
        %v1213 = vpack.c.b16 %v1183, %v1180
        %v1214 = vpack.c.b16 %v1184, %v1181
        %v1215 = vpack.c.b16 %v1188, %v1185
        %v1216 = vpack.c.b16 %v1189, %v1186
        %v1217 = vpack.c.b16 %v1190, %v1187
        %v1218 = vpack.c.b16 %v1194, %v1191
        %v1219 = vpack.c.b16 %v1195, %v1192
        %v1220 = vpack.c.b16 %v1196, %v1193
        %1245 = vmatprep.subr.bf16.mxu0 %v1219
        %1246 = vmatpush1.bf16.msra.mxu0 %v1218
        %1247 = vmatprep.subr.bf16.mxu0 %v1216
        %1248 = vmatpush1.bf16.msra.mxu0 %v1215
        %1249 = vmatprep.subr.bf16.mxu0 %v1213
        %1250 = vmatpush1.bf16.msra.mxu0 %v1212
        %1251 = vmatprep.subr.bf16.mxu0 %v1210
        %1252 = vmatpush1.bf16.msra.mxu0 %v1209
        %1253 = vmatprep.subr.bf16.mxu0 %v1207
        %1254 = vmatpush1.bf16.msra.mxu0 %v1206
        %1255 = vmatprep.subr.bf16.mxu0 %v1204
        %1256 = vmatpush1.bf16.msra.mxu0 %v1203
        %1257 = vmatprep.subr.bf16.mxu0 %v1201
        %1258 = vmatpush1.bf16.msra.mxu0 %v1200
        %1259 = vmatprep.subr.bf16.mxu0 %v1198
        %1260 = vmatpush1.bf16.msra.mxu0 %v1197
        %1261 = vmatprep.subr.bf16.mxu0 0
        %1262 = vmatpush2.bf16.msra.mxu0 0
        %1263 = vmatprep.subr.bf16.mxu0 0
        %1264 = vmatpush2.bf16.msra.mxu0 0
        %1265 = vmatprep.subr.bf16.mxu0 0
        %1266 = vmatpush2.bf16.msra.mxu0 0
        %1267 = vmatprep.subr.bf16.mxu0 0
        %1268 = vmatpush2.bf16.msra.mxu0 0
        %1269 = vmatprep.subr.bf16.mxu0 0
        %1270 = vmatpush2.bf16.msra.mxu0 0
        %1271 = vmatprep.subr.bf16.mxu0 0
        %1272 = vmatpush2.bf16.msra.mxu0 0
        %1273 = vmatprep.subr.bf16.mxu0 0
        %1274 = vmatpush2.bf16.msra.mxu0 0
        %1275 = vmatprep.subr.bf16.mxu0 0
        %1276 = vmatpush2.bf16.msra.mxu0 0
        %1277 = vmatprep.mubr.bf16.mxu0 0
        %1278 = vmatmul.mubr.bf16.gmra.mxu0 %v1067
        %v1279 = vpop.f32.mrf.mxu0
        %v1280 = vadd.f32 %v1105, %v1279
        %v1281 = vpop.f32.mrf.mxu0
        %v1282 = vadd.f32 %v1109, %v1281
        %v1283 = vpop.f32.mrf.mxu0
        %v1284 = vpop.f32.mrf.mxu0
        %1285 = vdwg.mxu0
        %1286 = vmatprep.subr.bf16.mxu0 0
        %1287 = vmatpush1.bf16.msra.mxu0 %v1220
        %1288 = vmatprep.subr.bf16.mxu0 0
        %1289 = vmatpush1.bf16.msra.mxu0 %v1217
        %1290 = vmatprep.subr.bf16.mxu0 0
        %1291 = vmatpush1.bf16.msra.mxu0 %v1214
        %1292 = vmatprep.subr.bf16.mxu0 0
        %1293 = vmatpush1.bf16.msra.mxu0 %v1211
        %1294 = vmatprep.subr.bf16.mxu0 0
        %1295 = vmatpush1.bf16.msra.mxu0 %v1208
        %1296 = vmatprep.subr.bf16.mxu0 0
        %1297 = vmatpush1.bf16.msra.mxu0 %v1205
        %1298 = vmatprep.subr.bf16.mxu0 0
        %1299 = vmatpush1.bf16.msra.mxu0 %v1202
        %1300 = vmatprep.subr.bf16.mxu0 0
        %1301 = vmatpush1.bf16.msra.mxu0 %v1199
        %1302 = vmatprep.subr.bf16.mxu0 0
        %1303 = vmatpush2.bf16.msra.mxu0 0
        %1304 = vmatprep.subr.bf16.mxu0 0
        %1305 = vmatpush2.bf16.msra.mxu0 0
        %1306 = vmatprep.subr.bf16.mxu0 0
        %1307 = vmatpush2.bf16.msra.mxu0 0
        %1308 = vmatprep.subr.bf16.mxu0 0
        %1309 = vmatpush2.bf16.msra.mxu0 0
        %1310 = vmatprep.subr.bf16.mxu0 0
        %1311 = vmatpush2.bf16.msra.mxu0 0
        %1312 = vmatprep.subr.bf16.mxu0 0
        %1313 = vmatpush2.bf16.msra.mxu0 0
        %1314 = vmatprep.subr.bf16.mxu0 0
        %1315 = vmatpush2.bf16.msra.mxu0 0
        %1316 = vmatprep.subr.bf16.mxu0 0
        %1317 = vmatpush2.bf16.msra.mxu0 0
        %1318 = vmatprep.mubr.bf16.mxu0 0
        %1319 = vmatmul.mubr.bf16.gmra.mxu0 %v1067
        %v1320 = vpop.f32.mrf.mxu0
        %v1321 = vadd.f32 %v1113, %v1320
        %v1322 = vpop.f32.mrf.mxu0
        %v1323 = vpop.f32.mrf.mxu0
        %v1324 = vpop.f32.mrf.mxu0
        %1325 = vdwg.mxu0
        %v1327 = vcombine.high %v659, %v659
        %v1329 = vpack.c.bf16 %v659, %v659
        %v1330 = vpack.c.bf16 %v1327, %v1327
        %v1331 = vld [vmem:[%s565] sm:$0xff]
        %v1332 = vld [vmem:[%s565 + $0x8] sm:$0xf]
        %v1333 = vld [vmem:[%s565 + $0xc] sm:$0xff]
        %v1334 = vld [vmem:[%s565 + $0x14] sm:$0xf]
        %v1335 = vld [vmem:[%s565 + $0x18] sm:$0xff]
        %v1336 = vld [vmem:[%s565 + $0x20] sm:$0xf]
        %v1337 = vld [vmem:[%s565 + $0x24] sm:$0xff]
        %v1338 = vld [vmem:[%s565 + $0x2c] sm:$0xf]
        %v1339 = vld [vmem:[%s565 + $0x30] sm:$0xff]
        %v1340 = vld [vmem:[%s565 + $0x38] sm:$0xf]
        %v1341 = vld [vmem:[%s565 + $0x3c] sm:$0xff]
        %v1342 = vld [vmem:[%s565 + $0x44] sm:$0xf]
        %v1343 = vld [vmem:[%s565 + $0x48] sm:$0xff]
        %v1344 = vld [vmem:[%s565 + $0x50] sm:$0xf]
        %v1345 = vld [vmem:[%s565 + $0x54] sm:$0xff]
        %v1346 = vld [vmem:[%s565 + $0x5c] sm:$0xf]
        %v1347 = vld [vmem:[%s565 + $0x60] sm:$0xff]
        %v1348 = vld [vmem:[%s565 + $0x68] sm:$0xf]
        %v1349 = vld [vmem:[%s565 + $0x6c] sm:$0xff]
        %v1350 = vld [vmem:[%s565 + $0x74] sm:$0xf]
        %v1351 = vld [vmem:[%s565 + $0x78] sm:$0xff]
        %v1352 = vld [vmem:[%s565 + $0x80] sm:$0xf]
        %v1353 = vld [vmem:[%s565 + $0x84] sm:$0xff]
        %v1354 = vld [vmem:[%s565 + $0x8c] sm:$0xf]
        %v1355 = vld [vmem:[%s565 + $0x90] sm:$0xff]
        %v1356 = vld [vmem:[%s565 + $0x98] sm:$0xf]
        %v1357 = vld [vmem:[%s565 + $0x9c] sm:$0xff]
        %v1358 = vld [vmem:[%s565 + $0xa4] sm:$0xf]
        %v1359 = vld [vmem:[%s565 + $0xa8] sm:$0xff]
        %v1360 = vld [vmem:[%s565 + $0xb0] sm:$0xf]
        %v1361 = vld [vmem:[%s565 + $0xb4] sm:$0xff]
        %v1362 = vld [vmem:[%s565 + $0xbc] sm:$0xf]
        %v1363 = vld [vmem:[%s565 + $0xc0] sm:$0xff]
        %v1364 = vld [vmem:[%s565 + $0xc8] sm:$0xf]
        %v1365 = vld [vmem:[%s565 + $0xcc] sm:$0xff]
        %v1366 = vld [vmem:[%s565 + $0xd4] sm:$0xf]
        %v1367 = vld [vmem:[%s565 + $0xd8] sm:$0xff]
        %v1368 = vld [vmem:[%s565 + $0xe0] sm:$0xf]
        %v1369 = vld [vmem:[%s565 + $0xe4] sm:$0xff]
        %v1370 = vld [vmem:[%s565 + $0xec] sm:$0xf]
        %v1371 = vld [vmem:[%s565 + $0xf0] sm:$0xff]
        %v1372 = vld [vmem:[%s565 + $0xf8] sm:$0xf]
        %v1373 = vld [vmem:[%s565 + $0xfc] sm:$0xff]
        %v1374 = vld [vmem:[%s565 + $0x104] sm:$0xf]
        %v1375 = vld [vmem:[%s565 + $0x108] sm:$0xff]
        %v1376 = vld [vmem:[%s565 + $0x110] sm:$0xf]
        %v1377 = vld [vmem:[%s565 + $0x114] sm:$0xff]
        %v1378 = vld [vmem:[%s565 + $0x11c] sm:$0xf]
        %v1379 = vld [vmem:[%s565 + $0x120] sm:$0xff]
        %v1380 = vld [vmem:[%s565 + $0x128] sm:$0xf]
        %v1381 = vld [vmem:[%s565 + $0x12c] sm:$0xff]
        %v1382 = vld [vmem:[%s565 + $0x134] sm:$0xf]
        %v1383 = vld [vmem:[%s565 + $0x138] sm:$0xff]
        %v1384 = vld [vmem:[%s565 + $0x140] sm:$0xf]
        %v1385 = vld [vmem:[%s565 + $0x144] sm:$0xff]
        %v1386 = vld [vmem:[%s565 + $0x14c] sm:$0xf]
        %v1387 = vld [vmem:[%s565 + $0x150] sm:$0xff]
        %v1388 = vld [vmem:[%s565 + $0x158] sm:$0xf]
        %v1389 = vld [vmem:[%s565 + $0x15c] sm:$0xff]
        %v1390 = vld [vmem:[%s565 + $0x164] sm:$0xf]
        %v1391 = vld [vmem:[%s565 + $0x168] sm:$0xff]
        %v1392 = vld [vmem:[%s565 + $0x170] sm:$0xf]
        %v1393 = vld [vmem:[%s565 + $0x174] sm:$0xff]
        %v1394 = vld [vmem:[%s565 + $0x17c] sm:$0xf]
        %v1395 = vld [vmem:[%s649] sm:$0x7]
        %v1397 = vlaneseq
        %v1398 = vshrl.u32 %v1397, 7
        %v1399 = vsub.s32 0, %v1398
        %v1400 = vrot.slane %v1395, %v1399
        %v1401 = vlaneseq
        %v1402 = vshrl.u32 %v1401, 7
        %v1403 = vsub.s32 1, %v1402
        %v1404 = vrot.slane %v1395, %v1403
        %v1405 = vlaneseq
        %v1406 = vshrl.u32 %v1405, 7
        %v1407 = vsub.s32 2, %v1406
        %v1408 = vrot.slane %v1395, %v1407
        %v1476 = vunpack.c.l.b16 %v1331
        %v1477 = vunpack.c.h.b16 %v1331
        %v1478 = vunpack.c.l.b16 %v1332
        %v1479 = vunpack.c.l.b16 %v1333
        %v1480 = vunpack.c.h.b16 %v1333
        %v1481 = vunpack.c.l.b16 %v1334
        %v1482 = vunpack.c.l.b16 %v1335
        %v1483 = vunpack.c.h.b16 %v1335
        %v1484 = vunpack.c.l.b16 %v1336
        %v1485 = vunpack.c.l.b16 %v1337
        %v1486 = vunpack.c.h.b16 %v1337
        %v1487 = vunpack.c.l.b16 %v1338
        %v1488 = vunpack.c.l.b16 %v1339
        %v1489 = vunpack.c.h.b16 %v1339
        %v1490 = vunpack.c.l.b16 %v1340
        %v1491 = vunpack.c.l.b16 %v1341
        %v1492 = vunpack.c.h.b16 %v1341
        %v1493 = vunpack.c.l.b16 %v1342
        %v1494 = vunpack.c.l.b16 %v1343
        %v1495 = vunpack.c.h.b16 %v1343
        %v1496 = vunpack.c.l.b16 %v1344
        %v1497 = vunpack.c.l.b16 %v1345
        %v1498 = vunpack.c.h.b16 %v1345
        %v1499 = vunpack.c.l.b16 %v1346
        %v1500 = vunpack.c.l.b16 %v1347
        %v1501 = vunpack.c.h.b16 %v1347
        %v1502 = vunpack.c.l.b16 %v1348
        %v1503 = vunpack.c.l.b16 %v1349
        %v1504 = vunpack.c.h.b16 %v1349
        %v1505 = vunpack.c.l.b16 %v1350
        %v1506 = vunpack.c.l.b16 %v1351
        %v1507 = vunpack.c.h.b16 %v1351
        %v1508 = vunpack.c.l.b16 %v1352
        %v1509 = vunpack.c.l.b16 %v1353
        %v1510 = vunpack.c.h.b16 %v1353
        %v1511 = vunpack.c.l.b16 %v1354
        %v1512 = vunpack.c.l.b16 %v1355
        %v1513 = vunpack.c.h.b16 %v1355
        %v1514 = vunpack.c.l.b16 %v1356
        %v1515 = vunpack.c.l.b16 %v1357
        %v1516 = vunpack.c.h.b16 %v1357
        %v1517 = vunpack.c.l.b16 %v1358
        %v1518 = vunpack.c.l.b16 %v1359
        %v1519 = vunpack.c.h.b16 %v1359
        %v1520 = vunpack.c.l.b16 %v1360
        %v1521 = vunpack.c.l.b16 %v1361
        %v1522 = vunpack.c.h.b16 %v1361
        %v1523 = vunpack.c.l.b16 %v1362
        %v1524 = vunpack.c.l.b16 %v1363
        %v1525 = vunpack.c.h.b16 %v1363
        %v1526 = vunpack.c.l.b16 %v1364
        %v1527 = vunpack.c.l.b16 %v1365
        %v1528 = vunpack.c.h.b16 %v1365
        %v1529 = vunpack.c.l.b16 %v1366
        %v1530 = vunpack.c.l.b16 %v1367
        %v1531 = vunpack.c.h.b16 %v1367
        %v1532 = vunpack.c.l.b16 %v1368
        %v1533 = vunpack.c.l.b16 %v1369
        %v1534 = vunpack.c.h.b16 %v1369
        %v1535 = vunpack.c.l.b16 %v1370
        %v1536 = vunpack.c.l.b16 %v1371
        %v1537 = vunpack.c.h.b16 %v1371
        %v1538 = vunpack.c.l.b16 %v1372
        %v1539 = vunpack.c.l.b16 %v1373
        %v1540 = vunpack.c.h.b16 %v1373
        %v1541 = vunpack.c.l.b16 %v1374
        %v1542 = vunpack.c.l.b16 %v1375
        %v1543 = vunpack.c.h.b16 %v1375
        %v1544 = vunpack.c.l.b16 %v1376
        %v1545 = vunpack.c.l.b16 %v1377
        %v1546 = vunpack.c.h.b16 %v1377
        %v1547 = vunpack.c.l.b16 %v1378
        %v1548 = vunpack.c.l.b16 %v1379
        %v1549 = vunpack.c.h.b16 %v1379
        %v1550 = vunpack.c.l.b16 %v1380
        %v1551 = vunpack.c.l.b16 %v1381
        %v1552 = vunpack.c.h.b16 %v1381
        %v1553 = vunpack.c.l.b16 %v1382
        %v1554 = vunpack.c.l.b16 %v1383
        %v1555 = vunpack.c.h.b16 %v1383
        %v1556 = vunpack.c.l.b16 %v1384
        %v1557 = vunpack.c.l.b16 %v1385
        %v1558 = vunpack.c.h.b16 %v1385
        %v1559 = vunpack.c.l.b16 %v1386
        %v1560 = vunpack.c.l.b16 %v1387
        %v1561 = vunpack.c.h.b16 %v1387
        %v1562 = vunpack.c.l.b16 %v1388
        %v1563 = vunpack.c.l.b16 %v1389
        %v1564 = vunpack.c.h.b16 %v1389
        %v1565 = vunpack.c.l.b16 %v1390
        %v1566 = vunpack.c.l.b16 %v1391
        %v1567 = vunpack.c.h.b16 %v1391
        %v1568 = vunpack.c.l.b16 %v1392
        %v1569 = vunpack.c.l.b16 %v1393
        %v1570 = vunpack.c.h.b16 %v1393
        %v1571 = vunpack.c.l.b16 %v1394
        %v1572 = vpack.c.b16 %v1479, %v1476
        %v1573 = vpack.c.b16 %v1480, %v1477
        %v1574 = vpack.c.b16 %v1481, %v1478
        %v1575 = vpack.c.b16 %v1485, %v1482
        %v1576 = vpack.c.b16 %v1486, %v1483
        %v1577 = vpack.c.b16 %v1487, %v1484
        %v1578 = vpack.c.b16 %v1491, %v1488
        %v1579 = vpack.c.b16 %v1492, %v1489
        %v1580 = vpack.c.b16 %v1493, %v1490
        %v1581 = vpack.c.b16 %v1497, %v1494
        %v1582 = vpack.c.b16 %v1498, %v1495
        %v1583 = vpack.c.b16 %v1499, %v1496
        %v1584 = vpack.c.b16 %v1503, %v1500
        %v1585 = vpack.c.b16 %v1504, %v1501
        %v1586 = vpack.c.b16 %v1505, %v1502
        %v1587 = vpack.c.b16 %v1509, %v1506
        %v1588 = vpack.c.b16 %v1510, %v1507
        %v1589 = vpack.c.b16 %v1511, %v1508
        %v1590 = vpack.c.b16 %v1515, %v1512
        %v1591 = vpack.c.b16 %v1516, %v1513
        %v1592 = vpack.c.b16 %v1517, %v1514
        %v1593 = vpack.c.b16 %v1521, %v1518
        %v1594 = vpack.c.b16 %v1522, %v1519
        %v1595 = vpack.c.b16 %v1523, %v1520
        %v1596 = vpack.c.b16 %v1527, %v1524
        %v1597 = vpack.c.b16 %v1528, %v1525
        %v1598 = vpack.c.b16 %v1529, %v1526
        %v1599 = vpack.c.b16 %v1533, %v1530
        %v1600 = vpack.c.b16 %v1534, %v1531
        %v1601 = vpack.c.b16 %v1535, %v1532
        %v1602 = vpack.c.b16 %v1539, %v1536
        %v1603 = vpack.c.b16 %v1540, %v1537
        %v1604 = vpack.c.b16 %v1541, %v1538
        %v1605 = vpack.c.b16 %v1545, %v1542
        %v1606 = vpack.c.b16 %v1546, %v1543
        %v1607 = vpack.c.b16 %v1547, %v1544
        %v1608 = vpack.c.b16 %v1551, %v1548
        %v1609 = vpack.c.b16 %v1552, %v1549
        %v1610 = vpack.c.b16 %v1553, %v1550
        %v1611 = vpack.c.b16 %v1557, %v1554
        %v1612 = vpack.c.b16 %v1558, %v1555
        %v1613 = vpack.c.b16 %v1559, %v1556
        %v1614 = vpack.c.b16 %v1563, %v1560
        %v1615 = vpack.c.b16 %v1564, %v1561
        %v1616 = vpack.c.b16 %v1565, %v1562
        %v1617 = vpack.c.b16 %v1569, %v1566
        %v1618 = vpack.c.b16 %v1570, %v1567
        %v1619 = vpack.c.b16 %v1571, %v1568
        %1668 = vmatprep.subr.bf16.mxu0 %v1594
        %1669 = vmatpush1.bf16.msra.mxu0 %v1593
        %1670 = vmatprep.subr.bf16.mxu0 %v1591
        %1671 = vmatpush1.bf16.msra.mxu0 %v1590
        %1672 = vmatprep.subr.bf16.mxu0 %v1588
        %1673 = vmatpush1.bf16.msra.mxu0 %v1587
        %1674 = vmatprep.subr.bf16.mxu0 %v1585
        %1675 = vmatpush1.bf16.msra.mxu0 %v1584
        %1676 = vmatprep.subr.bf16.mxu0 %v1582
        %1677 = vmatpush1.bf16.msra.mxu0 %v1581
        %1678 = vmatprep.subr.bf16.mxu0 %v1579
        %1679 = vmatpush1.bf16.msra.mxu0 %v1578
        %1680 = vmatprep.subr.bf16.mxu0 %v1576
        %1681 = vmatpush1.bf16.msra.mxu0 %v1575
        %1682 = vmatprep.subr.bf16.mxu0 %v1573
        %1683 = vmatpush1.bf16.msra.mxu0 %v1572
        %1684 = vmatprep.subr.bf16.mxu0 %v1618
        %1685 = vmatpush2.bf16.msra.mxu0 %v1617
        %1686 = vmatprep.subr.bf16.mxu0 %v1615
        %1687 = vmatpush2.bf16.msra.mxu0 %v1614
        %1688 = vmatprep.subr.bf16.mxu0 %v1612
        %1689 = vmatpush2.bf16.msra.mxu0 %v1611
        %1690 = vmatprep.subr.bf16.mxu0 %v1609
        %1691 = vmatpush2.bf16.msra.mxu0 %v1608
        %1692 = vmatprep.subr.bf16.mxu0 %v1606
        %1693 = vmatpush2.bf16.msra.mxu0 %v1605
        %1694 = vmatprep.subr.bf16.mxu0 %v1603
        %1695 = vmatpush2.bf16.msra.mxu0 %v1602
        %1696 = vmatprep.subr.bf16.mxu0 %v1600
        %1697 = vmatpush2.bf16.msra.mxu0 %v1599
        %1698 = vmatprep.subr.bf16.mxu0 %v1597
        %1699 = vmatpush2.bf16.msra.mxu0 %v1596
        %1700 = vmatprep.mubr.bf16.mxu0 %v1330
        %1701 = vmatmul.mubr.bf16.gmra.mxu0 %v1329
        %v1702 = vpop.f32.mrf.mxu0
        %v1703 = vadd.f32 %v1400, %v1702
        %v1704 = vpop.f32.mrf.mxu0
        %v1705 = vadd.f32 %v1404, %v1704
        %v1706 = vpop.f32.mrf.mxu0
        %v1707 = vpop.f32.mrf.mxu0
        %1708 = vdwg.mxu0
        %1709 = vmatprep.subr.bf16.mxu0 0
        %1710 = vmatpush1.bf16.msra.mxu0 %v1595
        %1711 = vmatprep.subr.bf16.mxu0 0
        %1712 = vmatpush1.bf16.msra.mxu0 %v1592
        %1713 = vmatprep.subr.bf16.mxu0 0
        %1714 = vmatpush1.bf16.msra.mxu0 %v1589
        %1715 = vmatprep.subr.bf16.mxu0 0
        %1716 = vmatpush1.bf16.msra.mxu0 %v1586
        %1717 = vmatprep.subr.bf16.mxu0 0
        %1718 = vmatpush1.bf16.msra.mxu0 %v1583
        %1719 = vmatprep.subr.bf16.mxu0 0
        %1720 = vmatpush1.bf16.msra.mxu0 %v1580
        %1721 = vmatprep.subr.bf16.mxu0 0
        %1722 = vmatpush1.bf16.msra.mxu0 %v1577
        %1723 = vmatprep.subr.bf16.mxu0 0
        %1724 = vmatpush1.bf16.msra.mxu0 %v1574
        %1725 = vmatprep.subr.bf16.mxu0 0
        %1726 = vmatpush2.bf16.msra.mxu0 %v1619
        %1727 = vmatprep.subr.bf16.mxu0 0
        %1728 = vmatpush2.bf16.msra.mxu0 %v1616
        %1729 = vmatprep.subr.bf16.mxu0 0
        %1730 = vmatpush2.bf16.msra.mxu0 %v1613
        %1731 = vmatprep.subr.bf16.mxu0 0
        %1732 = vmatpush2.bf16.msra.mxu0 %v1610
        %1733 = vmatprep.subr.bf16.mxu0 0
        %1734 = vmatpush2.bf16.msra.mxu0 %v1607
        %1735 = vmatprep.subr.bf16.mxu0 0
        %1736 = vmatpush2.bf16.msra.mxu0 %v1604
        %1737 = vmatprep.subr.bf16.mxu0 0
        %1738 = vmatpush2.bf16.msra.mxu0 %v1601
        %1739 = vmatprep.subr.bf16.mxu0 0
        %1740 = vmatpush2.bf16.msra.mxu0 %v1598
        %1741 = vmatprep.mubr.bf16.mxu0 %v1330
        %1742 = vmatmul.mubr.bf16.gmra.mxu0 %v1329
        %v1743 = vpop.f32.mrf.mxu0
        %v1744 = vadd.f32 %v1408, %v1743
        %v1745 = vpop.f32.mrf.mxu0
        %v1746 = vpop.f32.mrf.mxu0
        %v1747 = vpop.f32.mrf.mxu0
        %1748 = vdwg.mxu0
        %v1749 = vadd.f32 %v980, %v1280
        %v1750 = vxor.u32 %v1749, 2147483648
        %v1751 = vmul.f32 %v1750, 1.442695
        %v1752 = vpow.pop %v1751
        %v1753 = vadd.f32 %v1752, 1.0
        %v1754 = vrcp.pop %v1753
        %v1755 = vmul.f32 1.0, %v1754
        %v1756 = vadd.f32 %v982, %v1282
        %v1757 = vxor.u32 %v1756, 2147483648
        %v1758 = vmul.f32 %v1757, 1.442695
        %v1759 = vpow.pop %v1758
        %v1760 = vadd.f32 %v1759, 1.0
        %v1761 = vrcp.pop %v1760
        %v1762 = vmul.f32 1.0, %v1761
        %v1763 = vadd.f32 %v1021, %v1321
        %v1764 = vxor.u32 %v1763, 2147483648
        %v1765 = vmul.f32 %v1764, 1.442695
        %v1766 = vpow.pop %v1765
        %v1767 = vadd.f32 %v1766, 1.0
        %v1768 = vrcp.pop %v1767
        %v1769 = vmul.f32 1.0, %v1768
        %v1770 = vadd.f32 %v1062, %v1744
        %v1771 = vxor.u32 %v1770, 2147483648
        %v1772 = vmul.f32 %v1771, 1.442695
        %v1773 = vpow.pop %v1772
        %v1774 = vadd.f32 %v1773, 1.0
        %v1775 = vrcp.pop %v1774
        %v1776 = vmul.f32 1.0, %v1775
        %1778 = vset.pattern.permute.xlu0 0
        %1779 = vperm.xlu0 %1778, %v1776
        %v1780 = vpop.permute.xlu0 %1779
        %v1782 = vmul.f32 %v1703, %v1780
        %v1783 = vadd.f32 %v1782, 0.0
        %1784 = vset.pattern.permute.xlu0 1
        %1785 = vperm.xlu0 %1784, %v1776
        %v1786 = vpop.permute.xlu0 %1785
        %v1788 = vmul.f32 %v1705, %v1786
        %v1789 = vadd.f32 %v1783, %v1788
        %v1790 = vadd.f32 %v1023, %v1789
        %v1791 = vtanh.pop %v1790
        %v1792 = vmul.f32 %v1755, %v660
        %v1793 = vmul.f32 %v1762, %v1791
        %v1794 = vadd.f32 %v1792, %v1793
        %v1795 = vmul.f32 %v1769, %v1794
        %1796 = vst [vmem:[%s634] sm:$0xf] %v1795
        %1797 = vst [vmem:[%s641] sm:$0xf] %v1794
        %1798 = vst [vmem:[#allocation2] sm:$0xf] %v1795
        %s1799 = sand.u32 %s289, 1
        %s1800 = scalar_lea.sflag [#allocation5], %s1799
        %s1801 = sand.u32 %s289, 1
        %s1802 = smul.addr %s1801, 4
        %s1803 = scalar_lea.vmem [#allocation14], %s1802
        %s1804 = sand.u32 %s315, 1
        %s1805 = scalar_lea.sflag [#allocation16], %s1804
        %s1806 = sand.u32 %s315, 1
        %s1807 = smul.addr %s1806, 4
        %s1808 = scalar_lea.vmem [#allocation15], %s1807
        // Predicated region
        $region97: #{tpu_custom_call.1} parent=59 // pred_check
          %p1809 = pneg %p299
        $region98: #{tpu_custom_call.1} parent=59 // pred_check_branch
          %1811 = sbr.rel (%p1809) target = $region100
        $region99: #{tpu_custom_call.1} parent=59 // pred_region
          %s1813 = ssub.s32 64, 64
          %1814 = vsyncadd %s1800, %s1813
          %s1815 = smul.addr %s31, 64
          %s1816 = scalar_lea.hbm %s10, %s1815
          %s1818 = sshll.u32 %s1803, 4
          %s1819 = int_to_ptr.vmem [resolvable:$true] %s1818
          %1821 = dma.vmem_to_hbm [thread:$0]  %s1819, 64, %s1816, %s1800
        $region100: #{tpu_custom_call.1} parent=59 // pred_fallthru
          _
        // Predicated region
        $region101: #{tpu_custom_call.1} parent=59 // pred_check
          %p1822 = pneg %p325
        $region102: #{tpu_custom_call.1} parent=59 // pred_check_branch
          %1824 = sbr.rel (%p1822) target = $region104
        $region103: #{tpu_custom_call.1} parent=59 // pred_region
          %s1826 = ssub.s32 64, 64
          %1827 = vsyncadd %s1805, %s1826
          %s1828 = smul.addr %s31, 64
          %s1829 = scalar_lea.hbm %s11, %s1828
          %s1831 = sshll.u32 %s1808, 4
          %s1832 = int_to_ptr.vmem [resolvable:$true] %s1831
          %1834 = dma.vmem_to_hbm [thread:$0]  %s1832, 64, %s1829, %s1805
        $region104: #{tpu_custom_call.1} parent=59 // pred_fallthru
          _
      $region60: #{tpu_custom_call.1} parent=5 // pred_fallthru
        _
      %p1835 = scmp.le.s32.totalorder 2, %s26
      // Predicated region
      $region105: #{tpu_custom_call.1} parent=5 // pred_check
        %p1836 = pneg %p1835
      $region106: #{tpu_custom_call.1} parent=5 // pred_check_branch
        %1838 = sbr.rel (%p1836) target = $region108
      $region107: #{tpu_custom_call.1} parent=5 // pred_region
        %s1839 = ssub.s32 %s26, 2
        // Predicated region
        $region109: #{tpu_custom_call.1} parent=107 // pred_check
          %p1840 = pneg %p305
        $region110: #{tpu_custom_call.1} parent=107 // pred_check_branch
          %1842 = sbr.rel (%p1840) target = $region112
        $region111: #{tpu_custom_call.1} parent=107 // pred_region
          %s1843 = sand.u32 %s290, 1
          %s1844 = scalar_lea.sflag [#allocation5], %s1843
          %s1845 = sand.u32 %s290, 1
          %s1846 = smul.addr %s1845, 4
          %s1847 = scalar_lea.vmem [#allocation14], %s1846
          %1848 = dma.done %s1844, 64
        $region112: #{tpu_custom_call.1} parent=107 // pred_fallthru
          _
        // Predicated region
        $region113: #{tpu_custom_call.1} parent=107 // pred_check
          %p1849 = pneg %p331
        $region114: #{tpu_custom_call.1} parent=107 // pred_check_branch
          %1851 = sbr.rel (%p1849) target = $region116
        $region115: #{tpu_custom_call.1} parent=107 // pred_region
          %s1852 = sand.u32 %s316, 1
          %s1853 = scalar_lea.sflag [#allocation16], %s1852
          %s1854 = sand.u32 %s316, 1
          %s1855 = smul.addr %s1854, 4
          %s1856 = scalar_lea.vmem [#allocation15], %s1855
          %1857 = dma.done %s1853, 64
        $region116: #{tpu_custom_call.1} parent=107 // pred_fallthru
          _
      $region108: #{tpu_custom_call.1} parent=5 // pred_fallthru
        _
    $region6: #{tpu_custom_call.1} parent=1 // loop_footer
      %s30 = sadd.s32 1, %s26
    $region7: #{tpu_custom_call.1} parent=1 // loop_footer_branch
      %25 = sbr.rel target = $region3
    $region8: #{tpu_custom_call.1} parent=1 // loop_exit
      _
    %1858 = vsyncpa [#allocation4], 1
    %s1859 = scalar_lea.sflag [#allocation4], 1
    %1860 = vsyncpa %s1859, 1
    %1861 = vsyncpa [#allocation7], 1
    %1862 = vsyncpa [#allocation5], 1
    %s1863 = scalar_lea.sflag [#allocation5], 1
    %1864 = vsyncpa %s1863, 1
    %1865 = vsyncpa [#allocation16], 1
    %s1866 = scalar_lea.sflag [#allocation16], 1
    %1867 = vsyncpa %s1866, 1

</llo_original>
